<compile_context>
chip_gen: v5e
topology: v5e:2x2
jax: 0.10.0
libtpu: 0.0.40
codegen_flags: <defaults>
</compile_context>

<pallas_src>
import functools
import math

import jax
import jax.numpy as jnp
from jax.experimental import pallas as pl
from jax.experimental.pallas import tpu as pltpu


def _layer_norm(x, gamma, beta, *, eps, feat):
    # PyTorch module semantics: x.std(-1) is unbiased (N-1), eps added to std.
    mean = jnp.mean(x, axis=-1, keepdims=True)
    diff = x - mean
    var = jnp.sum(diff * diff, axis=-1, keepdims=True) * (1.0 / (feat - 1))
    std = jnp.sqrt(var)
    return gamma * diff / (std + eps) + beta


def _encoder_layer_kernel(
    x_ref, mask_ref,
    ln1_g_ref, ln1_b_ref,
    wq_ref, bq_ref, wk_ref, bk_ref, wv_ref, bv_ref, wo_ref, bo_ref,
    ln2_g_ref, ln2_b_ref,
    w1_ref, b1_ref, w2_ref, b2_ref,
    o_ref,
    *, num_heads, eps,
):
    x = x_ref[...].astype(jnp.float32)          # (S, D)
    mask = mask_ref[...]                        # (S, S), 1 = attend, 0 = masked
    S, D = x.shape
    dh = D // num_heads
    inv_sqrt_dh = 1.0 / math.sqrt(dh)

    # ---------- Sublayer 0: x + SelfAttn(LayerNorm(x)) ------------------------
    xn = _layer_norm(x, ln1_g_ref[...], ln1_b_ref[...], eps=eps, feat=D)

    q = jnp.dot(xn, wq_ref[...], preferred_element_type=jnp.float32) + bq_ref[...]
    k = jnp.dot(xn, wk_ref[...], preferred_element_type=jnp.float32) + bk_ref[...]
    v = jnp.dot(xn, wv_ref[...], preferred_element_type=jnp.float32) + bv_ref[...]
    wo = wo_ref[...]                            # (D, D)

    # Per-head attention (static unrolled loop over a small head count).
    # The output projection is folded per head: ctx @ Wo == sum_h ctx_h @ Wo[h]
    # which avoids any lane concatenation.
    attn_acc = jnp.zeros((S, D), jnp.float32)
    neg_big = jnp.float32(-1e9)
    for h in range(num_heads):
        sl = slice(h * dh, (h + 1) * dh)
        q_h = q[:, sl]                          # (S, dh)
        k_h = k[:, sl]
        v_h = v[:, sl]
        scores = jnp.einsum(
            "qd,kd->qk", q_h, k_h, preferred_element_type=jnp.float32
        ) * inv_sqrt_dh                          # (S, S)
        scores = jnp.where(mask == 0.0, neg_big, scores)
        scores = scores - jnp.max(scores, axis=-1, keepdims=True)
        p = jnp.exp(scores)
        p = p / jnp.sum(p, axis=-1, keepdims=True)
        ctx_h = jnp.dot(p, v_h, preferred_element_type=jnp.float32)  # (S, dh)
        attn_acc = attn_acc + jnp.dot(
            ctx_h, wo[sl, :], preferred_element_type=jnp.float32
        )
    attn_out = attn_acc + bo_ref[...]

    # TODO(synk): nn.Dropout is stochastic in training; treated as identity
    # (eval mode) here.
    x1 = x + attn_out

    # ---------- Sublayer 1: x1 + FFN(LayerNorm(x1)) ---------------------------
    xn2 = _layer_norm(x1, ln2_g_ref[...], ln2_b_ref[...], eps=eps, feat=D)
    h1 = jnp.dot(xn2, w1_ref[...], preferred_element_type=jnp.float32) + b1_ref[...]
    h1 = jnp.maximum(h1, 0.0)                   # ReLU
    ffn = jnp.dot(h1, w2_ref[...], preferred_element_type=jnp.float32) + b2_ref[...]

    o_ref[...] = (x1 + ffn).astype(o_ref.dtype)


_WEIGHT_ORDER = (
    "ln1_g", "ln1_b",
    "wq", "bq", "wk", "bk", "wv", "bv", "wo", "bo",
    "ln2_g", "ln2_b",
    "w1", "b1", "w2", "b2",
)


def encoder_layer_forward(x, mask, params, *, num_heads, eps=1e-6):
    """Pallas equivalent of EncoderLayer.forward.

    x:      (B, S, d_model) float activations
    mask:   (B, S, S) float {0, 1}; 0 positions are masked out of attention
    params: dict of 2-D weight/bias arrays (biases / LN params shaped (1, dim))
    """
    B, S, D = x.shape
    assert D % num_heads == 0
    weights = [params[name] for name in _WEIGHT_ORDER]

    in_specs = [
        pl.BlockSpec((None, S, D), lambda b: (b, 0, 0)),   # x    -> (S, D) slab
        pl.BlockSpec((None, S, S), lambda b: (b, 0, 0)),   # mask -> (S, S) slab
    ]
    # All weights are small 2-D arrays; keep each resident (same block every step).
    for w in weights:
        in_specs.append(pl.BlockSpec(w.shape, lambda b: (0, 0)))

    kernel = functools.partial(_encoder_layer_kernel, num_heads=num_heads, eps=eps)

    return pl.pallas_call(
        kernel,
        out_shape=jax.ShapeDtypeStruct((B, S, D), x.dtype),
        grid_spec=pltpu.PrefetchScalarGridSpec(
            num_scalar_prefetch=0,
            grid=(B,),
            in_specs=in_specs,
            out_specs=pl.BlockSpec((None, S, D), lambda b: (b, 0, 0)),
        ),
        compiler_params=pltpu.CompilerParams(
            # Batch slabs are independent -> shard across TensorCores on v7x.
            dimension_semantics=("parallel",),
        ),
    )(x, mask, *weights)


def _reference(x, mask, p, num_heads, eps):
    """Pure-JAX reference matching the PyTorch module semantics (eval mode)."""
    B, S, D = x.shape
    dh = D // num_heads

    def ln(t, g, b):
        mean = t.mean(-1, keepdims=True)
        var = ((t - mean) ** 2).sum(-1, keepdims=True) / (D - 1)
        std = jnp.sqrt(var)
        return g * (t - mean) / (std + eps) + b

    xn = ln(x, p["ln1_g"], p["ln1_b"])
    q = xn @ p["wq"] + p["bq"]
    k = xn @ p["wk"] + p["bk"]
    v = xn @ p["wv"] + p["bv"]
    qh = q.reshape(B, S, num_heads, dh)
    kh = k.reshape(B, S, num_heads, dh)
    vh = v.reshape(B, S, num_heads, dh)
    scores = jnp.einsum("bqhd,bkhd->bhqk", qh, kh) / math.sqrt(dh)
    scores = jnp.where(mask[:, None, :, :] == 0.0, -1e9, scores)
    attn = jax.nn.softmax(scores, axis=-1)
    ctx = jnp.einsum("bhqk,bkhd->bqhd", attn, vh).reshape(B, S, D)
    x1 = x + (ctx @ p["wo"] + p["bo"])
    xn2 = ln(x1, p["ln2_g"], p["ln2_b"])
    h1 = jax.nn.relu(xn2 @ p["w1"] + p["b1"])
    return x1 + (h1 @ p["w2"] + p["b2"])


if __name__ == "__main__":
    # Small shapes consistent with the module: batch=2, seq=8, d_model=32.
    B, S, D = 2, 8, 32
    H, d_ff = 4, 64
    eps = 1e-6

    key = jax.random.PRNGKey(0)
    keys = jax.random.split(key, 16)
    scale = 0.1

    def init(k, shape):
        return jax.random.normal(k, shape, dtype=jnp.float32) * scale

    params = {
        "ln1_g": jnp.ones((1, D), jnp.float32),
        "ln1_b": jnp.zeros((1, D), jnp.float32),
        "wq": init(keys[0], (D, D)), "bq": init(keys[1], (1, D)),
        "wk": init(keys[2], (D, D)), "bk": init(keys[3], (1, D)),
        "wv": init(keys[4], (D, D)), "bv": init(keys[5], (1, D)),
        "wo": init(keys[6], (D, D)), "bo": init(keys[7], (1, D)),
        "ln2_g": jnp.ones((1, D), jnp.float32),
        "ln2_b": jnp.zeros((1, D), jnp.float32),
        "w1": init(keys[8], (D, d_ff)), "b1": init(keys[9], (1, d_ff)),
        "w2": init(keys[10], (d_ff, D)), "b2": init(keys[11], (1, D)),
    }

    x = jax.random.normal(keys[12], (B, S, D), dtype=jnp.float32)

    # Padding-style attention mask: batch 1 masks its last two key positions.
    mask = jnp.ones((B, S, S), dtype=jnp.float32)
    mask = mask.at[1, :, S - 2:].set(0.0)

    out = encoder_layer_forward(x, mask, params, num_heads=H, eps=eps)
    out = jax.block_until_ready(out)

    ref = _reference(x, mask, params, H, eps)
    assert out.shape == (B, S, D)
    assert out.dtype == jnp.float32
    assert jnp.allclose(out, ref, atol=5e-3, rtol=5e-3), float(
        jnp.max(jnp.abs(out - ref))
    )

    print("KERNEL_OK")
</pallas_src>

<mosaic_0001>
module attributes {stable_mosaic.version = 11 : i64} {
  func.func @_encoder_layer_kernel(%arg0: i32, %arg1: memref<1x8x32xf32, #tpu.memory_space<vmem>>, %arg2: memref<1x8x8xf32, #tpu.memory_space<vmem>>, %arg3: memref<1x32xf32, #tpu.memory_space<vmem>>, %arg4: memref<1x32xf32, #tpu.memory_space<vmem>>, %arg5: memref<32x32xf32, #tpu.memory_space<vmem>>, %arg6: memref<1x32xf32, #tpu.memory_space<vmem>>, %arg7: memref<32x32xf32, #tpu.memory_space<vmem>>, %arg8: memref<1x32xf32, #tpu.memory_space<vmem>>, %arg9: memref<32x32xf32, #tpu.memory_space<vmem>>, %arg10: memref<1x32xf32, #tpu.memory_space<vmem>>, %arg11: memref<32x32xf32, #tpu.memory_space<vmem>>, %arg12: memref<1x32xf32, #tpu.memory_space<vmem>>, %arg13: memref<1x32xf32, #tpu.memory_space<vmem>>, %arg14: memref<1x32xf32, #tpu.memory_space<vmem>>, %arg15: memref<32x64xf32, #tpu.memory_space<vmem>>, %arg16: memref<1x64xf32, #tpu.memory_space<vmem>>, %arg17: memref<64x32xf32, #tpu.memory_space<vmem>>, %arg18: memref<1x32xf32, #tpu.memory_space<vmem>>, %arg19: memref<1x8x32xf32, #tpu.memory_space<vmem>>) attributes {dimension_semantics = [#tpu.dimension_semantics<parallel>], iteration_bounds = array<i64: 2>, scalar_prefetch = 0 : i64, scratch_operands = 0 : i64, tpu.core_type = #tpu.core_type<tc>, window_params = [{transform_indices = @transform_0, window_bounds = array<i64: 1, 8, 32>}, {transform_indices = @transform_1, window_bounds = array<i64: 1, 8, 8>}, {pipeline_mode = #tpu.pipeline_mode<synchronous>, transform_indices = @transform_2, window_bounds = array<i64: 1, 32>}, {pipeline_mode = #tpu.pipeline_mode<synchronous>, transform_indices = @transform_3, window_bounds = array<i64: 1, 32>}, {pipeline_mode = #tpu.pipeline_mode<synchronous>, transform_indices = @transform_4, window_bounds = array<i64: 32, 32>}, {pipeline_mode = #tpu.pipeline_mode<synchronous>, transform_indices = @transform_5, window_bounds = array<i64: 1, 32>}, {pipeline_mode = #tpu.pipeline_mode<synchronous>, transform_indices = @transform_6, window_bounds = array<i64: 32, 32>}, {pipeline_mode = #tpu.pipeline_mode<synchronous>, transform_indices = @transform_7, window_bounds = array<i64: 1, 32>}, {pipeline_mode = #tpu.pipeline_mode<synchronous>, transform_indices = @transform_8, window_bounds = array<i64: 32, 32>}, {pipeline_mode = #tpu.pipeline_mode<synchronous>, transform_indices = @transform_9, window_bounds = array<i64: 1, 32>}, {pipeline_mode = #tpu.pipeline_mode<synchronous>, transform_indices = @transform_10, window_bounds = array<i64: 32, 32>}, {pipeline_mode = #tpu.pipeline_mode<synchronous>, transform_indices = @transform_11, window_bounds = array<i64: 1, 32>}, {pipeline_mode = #tpu.pipeline_mode<synchronous>, transform_indices = @transform_12, window_bounds = array<i64: 1, 32>}, {pipeline_mode = #tpu.pipeline_mode<synchronous>, transform_indices = @transform_13, window_bounds = array<i64: 1, 32>}, {pipeline_mode = #tpu.pipeline_mode<synchronous>, transform_indices = @transform_14, window_bounds = array<i64: 32, 64>}, {pipeline_mode = #tpu.pipeline_mode<synchronous>, transform_indices = @transform_15, window_bounds = array<i64: 1, 64>}, {pipeline_mode = #tpu.pipeline_mode<synchronous>, transform_indices = @transform_16, window_bounds = array<i64: 64, 32>}, {pipeline_mode = #tpu.pipeline_mode<synchronous>, transform_indices = @transform_17, window_bounds = array<i64: 1, 32>}, {transform_indices = @transform_18, window_bounds = array<i64: 1, 8, 32>}]} {
    %c0 = arith.constant 0 : index
    %c0_0 = arith.constant 0 : index
    %c0_1 = arith.constant 0 : index
    %0 = vector.load %arg1[%c0, %c0_0, %c0_1] : memref<1x8x32xf32, #tpu.memory_space<vmem>>, vector<1x8x32xf32>
    %1 = vector.shape_cast %0 : vector<1x8x32xf32> to vector<8x32xf32>
    %c0_2 = arith.constant 0 : index
    %c0_3 = arith.constant 0 : index
    %c0_4 = arith.constant 0 : index
    %2 = vector.load %arg2[%c0_2, %c0_3, %c0_4] : memref<1x8x8xf32, #tpu.memory_space<vmem>>, vector<1x8x8xf32>
    %3 = vector.shape_cast %2 : vector<1x8x8xf32> to vector<8x8xf32>
    %c0_5 = arith.constant 0 : index
    %c0_6 = arith.constant 0 : index
    %4 = vector.load %arg3[%c0_5, %c0_6] : memref<1x32xf32, #tpu.memory_space<vmem>>, vector<1x32xf32>
    %c0_7 = arith.constant 0 : index
    %c0_8 = arith.constant 0 : index
    %5 = vector.load %arg4[%c0_7, %c0_8] : memref<1x32xf32, #tpu.memory_space<vmem>>, vector<1x32xf32>
    %cst = arith.constant dense<0.000000e+00> : vector<8xf32>
    %6 = vector.multi_reduction <add>, %1, %cst [1] : vector<8x32xf32> to vector<8xf32>
    %7 = vector.shape_cast %6 : vector<8xf32> to vector<8x1xf32>
    %cst_9 = arith.constant 3.200000e+01 : f32
    %8 = vector.broadcast %cst_9 : f32 to vector<8x1xf32>
    %9 = arith.divf %7, %8 : vector<8x1xf32>
    %10 = vector.broadcast %9 : vector<8x1xf32> to vector<8x32xf32>
    %11 = arith.subf %1, %10 : vector<8x32xf32>
    %12 = arith.mulf %11, %11 : vector<8x32xf32>
    %cst_10 = arith.constant dense<0.000000e+00> : vector<8xf32>
    %13 = vector.multi_reduction <add>, %12, %cst_10 [1] : vector<8x32xf32> to vector<8xf32>
    %14 = vector.shape_cast %13 : vector<8xf32> to vector<8x1xf32>
    %cst_11 = arith.constant 0.0322580636 : f32
    %15 = vector.broadcast %cst_11 : f32 to vector<8x1xf32>
    %16 = arith.mulf %14, %15 : vector<8x1xf32>
    %17 = math.sqrt %16 : vector<8x1xf32>
    %18 = vector.broadcast %4 : vector<1x32xf32> to vector<8x32xf32>
    %19 = arith.mulf %18, %11 : vector<8x32xf32>
    %cst_12 = arith.constant 9.99999997E-7 : f32
    %20 = vector.broadcast %cst_12 : f32 to vector<8x1xf32>
    %21 = arith.addf %17, %20 : vector<8x1xf32>
    %22 = vector.broadcast %21 : vector<8x1xf32> to vector<8x32xf32>
    %23 = arith.divf %19, %22 : vector<8x32xf32>
    %24 = vector.broadcast %5 : vector<1x32xf32> to vector<8x32xf32>
    %25 = arith.addf %23, %24 : vector<8x32xf32>
    %c0_13 = arith.constant 0 : index
    %c0_14 = arith.constant 0 : index
    %26 = vector.load %arg5[%c0_13, %c0_14] : memref<32x32xf32, #tpu.memory_space<vmem>>, vector<32x32xf32>
    %cst_15 = arith.constant dense<0.000000e+00> : vector<8x32xf32>
    %27 = tpu.matmul %25, %26, %cst_15 {dimension_numbers = #tpu.dot_dimension_numbers<[1], [0], [0], [1], [0, 0, 1, 1], [], []>} : vector<8x32xf32>, vector<32x32xf32>, vector<8x32xf32> -> vector<8x32xf32>
    %c0_16 = arith.constant 0 : index
    %c0_17 = arith.constant 0 : index
    %28 = vector.load %arg6[%c0_16, %c0_17] : memref<1x32xf32, #tpu.memory_space<vmem>>, vector<1x32xf32>
    %29 = vector.broadcast %28 : vector<1x32xf32> to vector<8x32xf32>
    %30 = arith.addf %27, %29 : vector<8x32xf32>
    %c0_18 = arith.constant 0 : index
    %c0_19 = arith.constant 0 : index
    %31 = vector.load %arg7[%c0_18, %c0_19] : memref<32x32xf32, #tpu.memory_space<vmem>>, vector<32x32xf32>
    %cst_20 = arith.constant dense<0.000000e+00> : vector<8x32xf32>
    %32 = tpu.matmul %25, %31, %cst_20 {dimension_numbers = #tpu.dot_dimension_numbers<[1], [0], [0], [1], [0, 0, 1, 1], [], []>} : vector<8x32xf32>, vector<32x32xf32>, vector<8x32xf32> -> vector<8x32xf32>
    %c0_21 = arith.constant 0 : index
    %c0_22 = arith.constant 0 : index
    %33 = vector.load %arg8[%c0_21, %c0_22] : memref<1x32xf32, #tpu.memory_space<vmem>>, vector<1x32xf32>
    %34 = vector.broadcast %33 : vector<1x32xf32> to vector<8x32xf32>
    %35 = arith.addf %32, %34 : vector<8x32xf32>
    %c0_23 = arith.constant 0 : index
    %c0_24 = arith.constant 0 : index
    %36 = vector.load %arg9[%c0_23, %c0_24] : memref<32x32xf32, #tpu.memory_space<vmem>>, vector<32x32xf32>
    %cst_25 = arith.constant dense<0.000000e+00> : vector<8x32xf32>
    %37 = tpu.matmul %25, %36, %cst_25 {dimension_numbers = #tpu.dot_dimension_numbers<[1], [0], [0], [1], [0, 0, 1, 1], [], []>} : vector<8x32xf32>, vector<32x32xf32>, vector<8x32xf32> -> vector<8x32xf32>
    %c0_26 = arith.constant 0 : index
    %c0_27 = arith.constant 0 : index
    %38 = vector.load %arg10[%c0_26, %c0_27] : memref<1x32xf32, #tpu.memory_space<vmem>>, vector<1x32xf32>
    %39 = vector.broadcast %38 : vector<1x32xf32> to vector<8x32xf32>
    %40 = arith.addf %37, %39 : vector<8x32xf32>
    %c0_28 = arith.constant 0 : index
    %c0_29 = arith.constant 0 : index
    %41 = vector.load %arg11[%c0_28, %c0_29] : memref<32x32xf32, #tpu.memory_space<vmem>>, vector<32x32xf32>
    %cst_30 = arith.constant 0.000000e+00 : f32
    %42 = vector.broadcast %cst_30 : f32 to vector<8x32xf32>
    %43 = vector.extract_strided_slice %30 {offsets = [0, 0], sizes = [8, 8], strides = [1, 1]} : vector<8x32xf32> to vector<8x8xf32>
    %44 = vector.extract_strided_slice %35 {offsets = [0, 0], sizes = [8, 8], strides = [1, 1]} : vector<8x32xf32> to vector<8x8xf32>
    %45 = vector.extract_strided_slice %40 {offsets = [0, 0], sizes = [8, 8], strides = [1, 1]} : vector<8x32xf32> to vector<8x8xf32>
    "tpu.trace_start"() <{level = 10 : i32, message = "qd,kd->qk"}> : () -> ()
    %cst_31 = arith.constant dense<0.000000e+00> : vector<8x8xf32>
    %46 = tpu.matmul %43, %44, %cst_31 {dimension_numbers = #tpu.dot_dimension_numbers<[1], [1], [0], [0], [0, 0, 1, 0], [], []>} : vector<8x8xf32>, vector<8x8xf32>, vector<8x8xf32> -> vector<8x8xf32>
    "tpu.trace_stop"() : () -> ()
    %cst_32 = arith.constant 0.353553385 : f32
    %47 = vector.broadcast %cst_32 : f32 to vector<8x8xf32>
    %48 = arith.mulf %46, %47 : vector<8x8xf32>
    %cst_33 = arith.constant 0.000000e+00 : f32
    %49 = vector.broadcast %cst_33 : f32 to vector<8x8xf32>
    %50 = arith.cmpf oeq, %3, %49 : vector<8x8xf32>
    %cst_34 = arith.constant -1.000000e+09 : f32
    %51 = vector.broadcast %cst_34 : f32 to vector<8x8xf32>
    %52 = arith.select %50, %51, %48 : vector<8x8xi1>, vector<8x8xf32>
    %cst_35 = arith.constant dense<0xFF800000> : vector<8xf32>
    %53 = vector.multi_reduction <maximumf>, %52, %cst_35 [1] : vector<8x8xf32> to vector<8xf32>
    %54 = vector.shape_cast %53 : vector<8xf32> to vector<8x1xf32>
    %55 = vector.broadcast %54 : vector<8x1xf32> to vector<8x8xf32>
    %56 = arith.subf %52, %55 : vector<8x8xf32>
    %57 = math.exp %56 : vector<8x8xf32>
    %cst_36 = arith.constant dense<0.000000e+00> : vector<8xf32>
    %58 = vector.multi_reduction <add>, %57, %cst_36 [1] : vector<8x8xf32> to vector<8xf32>
    %59 = vector.shape_cast %58 : vector<8xf32> to vector<8x1xf32>
    %60 = vector.broadcast %59 : vector<8x1xf32> to vector<8x8xf32>
    %61 = arith.divf %57, %60 : vector<8x8xf32>
    %cst_37 = arith.constant dense<0.000000e+00> : vector<8x8xf32>
    %62 = tpu.matmul %61, %45, %cst_37 {dimension_numbers = #tpu.dot_dimension_numbers<[1], [0], [0], [1], [0, 0, 1, 1], [], []>} : vector<8x8xf32>, vector<8x8xf32>, vector<8x8xf32> -> vector<8x8xf32>
    %63 = vector.extract_strided_slice %41 {offsets = [0, 0], sizes = [8, 32], strides = [1, 1]} : vector<32x32xf32> to vector<8x32xf32>
    %cst_38 = arith.constant dense<0.000000e+00> : vector<8x32xf32>
    %64 = tpu.matmul %62, %63, %cst_38 {dimension_numbers = #tpu.dot_dimension_numbers<[1], [0], [0], [1], [0, 0, 1, 1], [], []>} : vector<8x8xf32>, vector<8x32xf32>, vector<8x32xf32> -> vector<8x32xf32>
    %65 = arith.addf %42, %64 : vector<8x32xf32>
    %66 = vector.extract_strided_slice %30 {offsets = [0, 8], sizes = [8, 8], strides = [1, 1]} : vector<8x32xf32> to vector<8x8xf32>
    %67 = vector.extract_strided_slice %35 {offsets = [0, 8], sizes = [8, 8], strides = [1, 1]} : vector<8x32xf32> to vector<8x8xf32>
    %68 = vector.extract_strided_slice %40 {offsets = [0, 8], sizes = [8, 8], strides = [1, 1]} : vector<8x32xf32> to vector<8x8xf32>
    "tpu.trace_start"() <{level = 10 : i32, message = "qd,kd->qk"}> : () -> ()
    %cst_39 = arith.constant dense<0.000000e+00> : vector<8x8xf32>
    %69 = tpu.matmul %66, %67, %cst_39 {dimension_numbers = #tpu.dot_dimension_numbers<[1], [1], [0], [0], [0, 0, 1, 0], [], []>} : vector<8x8xf32>, vector<8x8xf32>, vector<8x8xf32> -> vector<8x8xf32>
    "tpu.trace_stop"() : () -> ()
    %cst_40 = arith.constant 0.353553385 : f32
    %70 = vector.broadcast %cst_40 : f32 to vector<8x8xf32>
    %71 = arith.mulf %69, %70 : vector<8x8xf32>
    %cst_41 = arith.constant 0.000000e+00 : f32
    %72 = vector.broadcast %cst_41 : f32 to vector<8x8xf32>
    %73 = arith.cmpf oeq, %3, %72 : vector<8x8xf32>
    %cst_42 = arith.constant -1.000000e+09 : f32
    %74 = vector.broadcast %cst_42 : f32 to vector<8x8xf32>
    %75 = arith.select %73, %74, %71 : vector<8x8xi1>, vector<8x8xf32>
    %cst_43 = arith.constant dense<0xFF800000> : vector<8xf32>
    %76 = vector.multi_reduction <maximumf>, %75, %cst_43 [1] : vector<8x8xf32> to vector<8xf32>
    %77 = vector.shape_cast %76 : vector<8xf32> to vector<8x1xf32>
    %78 = vector.broadcast %77 : vector<8x1xf32> to vector<8x8xf32>
    %79 = arith.subf %75, %78 : vector<8x8xf32>
    %80 = math.exp %79 : vector<8x8xf32>
    %cst_44 = arith.constant dense<0.000000e+00> : vector<8xf32>
    %81 = vector.multi_reduction <add>, %80, %cst_44 [1] : vector<8x8xf32> to vector<8xf32>
    %82 = vector.shape_cast %81 : vector<8xf32> to vector<8x1xf32>
    %83 = vector.broadcast %82 : vector<8x1xf32> to vector<8x8xf32>
    %84 = arith.divf %80, %83 : vector<8x8xf32>
    %cst_45 = arith.constant dense<0.000000e+00> : vector<8x8xf32>
    %85 = tpu.matmul %84, %68, %cst_45 {dimension_numbers = #tpu.dot_dimension_numbers<[1], [0], [0], [1], [0, 0, 1, 1], [], []>} : vector<8x8xf32>, vector<8x8xf32>, vector<8x8xf32> -> vector<8x8xf32>
    %86 = vector.extract_strided_slice %41 {offsets = [8, 0], sizes = [8, 32], strides = [1, 1]} : vector<32x32xf32> to vector<8x32xf32>
    %cst_46 = arith.constant dense<0.000000e+00> : vector<8x32xf32>
    %87 = tpu.matmul %85, %86, %cst_46 {dimension_numbers = #tpu.dot_dimension_numbers<[1], [0], [0], [1], [0, 0, 1, 1], [], []>} : vector<8x8xf32>, vector<8x32xf32>, vector<8x32xf32> -> vector<8x32xf32>
    %88 = arith.addf %65, %87 : vector<8x32xf32>
    %89 = vector.extract_strided_slice %30 {offsets = [0, 16], sizes = [8, 8], strides = [1, 1]} : vector<8x32xf32> to vector<8x8xf32>
    %90 = vector.extract_strided_slice %35 {offsets = [0, 16], sizes = [8, 8], strides = [1, 1]} : vector<8x32xf32> to vector<8x8xf32>
    %91 = vector.extract_strided_slice %40 {offsets = [0, 16], sizes = [8, 8], strides = [1, 1]} : vector<8x32xf32> to vector<8x8xf32>
    "tpu.trace_start"() <{level = 10 : i32, message = "qd,kd->qk"}> : () -> ()
    %cst_47 = arith.constant dense<0.000000e+00> : vector<8x8xf32>
    %92 = tpu.matmul %89, %90, %cst_47 {dimension_numbers = #tpu.dot_dimension_numbers<[1], [1], [0], [0], [0, 0, 1, 0], [], []>} : vector<8x8xf32>, vector<8x8xf32>, vector<8x8xf32> -> vector<8x8xf32>
    "tpu.trace_stop"() : () -> ()
    %cst_48 = arith.constant 0.353553385 : f32
    %93 = vector.broadcast %cst_48 : f32 to vector<8x8xf32>
    %94 = arith.mulf %92, %93 : vector<8x8xf32>
    %cst_49 = arith.constant 0.000000e+00 : f32
    %95 = vector.broadcast %cst_49 : f32 to vector<8x8xf32>
    %96 = arith.cmpf oeq, %3, %95 : vector<8x8xf32>
    %cst_50 = arith.constant -1.000000e+09 : f32
    %97 = vector.broadcast %cst_50 : f32 to vector<8x8xf32>
    %98 = arith.select %96, %97, %94 : vector<8x8xi1>, vector<8x8xf32>
    %cst_51 = arith.constant dense<0xFF800000> : vector<8xf32>
    %99 = vector.multi_reduction <maximumf>, %98, %cst_51 [1] : vector<8x8xf32> to vector<8xf32>
    %100 = vector.shape_cast %99 : vector<8xf32> to vector<8x1xf32>
    %101 = vector.broadcast %100 : vector<8x1xf32> to vector<8x8xf32>
    %102 = arith.subf %98, %101 : vector<8x8xf32>
    %103 = math.exp %102 : vector<8x8xf32>
    %cst_52 = arith.constant dense<0.000000e+00> : vector<8xf32>
    %104 = vector.multi_reduction <add>, %103, %cst_52 [1] : vector<8x8xf32> to vector<8xf32>
    %105 = vector.shape_cast %104 : vector<8xf32> to vector<8x1xf32>
    %106 = vector.broadcast %105 : vector<8x1xf32> to vector<8x8xf32>
    %107 = arith.divf %103, %106 : vector<8x8xf32>
    %cst_53 = arith.constant dense<0.000000e+00> : vector<8x8xf32>
    %108 = tpu.matmul %107, %91, %cst_53 {dimension_numbers = #tpu.dot_dimension_numbers<[1], [0], [0], [1], [0, 0, 1, 1], [], []>} : vector<8x8xf32>, vector<8x8xf32>, vector<8x8xf32> -> vector<8x8xf32>
    %109 = vector.extract_strided_slice %41 {offsets = [16, 0], sizes = [8, 32], strides = [1, 1]} : vector<32x32xf32> to vector<8x32xf32>
    %cst_54 = arith.constant dense<0.000000e+00> : vector<8x32xf32>
    %110 = tpu.matmul %108, %109, %cst_54 {dimension_numbers = #tpu.dot_dimension_numbers<[1], [0], [0], [1], [0, 0, 1, 1], [], []>} : vector<8x8xf32>, vector<8x32xf32>, vector<8x32xf32> -> vector<8x32xf32>
    %111 = arith.addf %88, %110 : vector<8x32xf32>
    %112 = vector.extract_strided_slice %30 {offsets = [0, 24], sizes = [8, 8], strides = [1, 1]} : vector<8x32xf32> to vector<8x8xf32>
    %113 = vector.extract_strided_slice %35 {offsets = [0, 24], sizes = [8, 8], strides = [1, 1]} : vector<8x32xf32> to vector<8x8xf32>
    %114 = vector.extract_strided_slice %40 {offsets = [0, 24], sizes = [8, 8], strides = [1, 1]} : vector<8x32xf32> to vector<8x8xf32>
    "tpu.trace_start"() <{level = 10 : i32, message = "qd,kd->qk"}> : () -> ()
    %cst_55 = arith.constant dense<0.000000e+00> : vector<8x8xf32>
    %115 = tpu.matmul %112, %113, %cst_55 {dimension_numbers = #tpu.dot_dimension_numbers<[1], [1], [0], [0], [0, 0, 1, 0], [], []>} : vector<8x8xf32>, vector<8x8xf32>, vector<8x8xf32> -> vector<8x8xf32>
    "tpu.trace_stop"() : () -> ()
    %cst_56 = arith.constant 0.353553385 : f32
    %116 = vector.broadcast %cst_56 : f32 to vector<8x8xf32>
    %117 = arith.mulf %115, %116 : vector<8x8xf32>
    %cst_57 = arith.constant 0.000000e+00 : f32
    %118 = vector.broadcast %cst_57 : f32 to vector<8x8xf32>
    %119 = arith.cmpf oeq, %3, %118 : vector<8x8xf32>
    %cst_58 = arith.constant -1.000000e+09 : f32
    %120 = vector.broadcast %cst_58 : f32 to vector<8x8xf32>
    %121 = arith.select %119, %120, %117 : vector<8x8xi1>, vector<8x8xf32>
    %cst_59 = arith.constant dense<0xFF800000> : vector<8xf32>
    %122 = vector.multi_reduction <maximumf>, %121, %cst_59 [1] : vector<8x8xf32> to vector<8xf32>
    %123 = vector.shape_cast %122 : vector<8xf32> to vector<8x1xf32>
    %124 = vector.broadcast %123 : vector<8x1xf32> to vector<8x8xf32>
    %125 = arith.subf %121, %124 : vector<8x8xf32>
    %126 = math.exp %125 : vector<8x8xf32>
    %cst_60 = arith.constant dense<0.000000e+00> : vector<8xf32>
    %127 = vector.multi_reduction <add>, %126, %cst_60 [1] : vector<8x8xf32> to vector<8xf32>
    %128 = vector.shape_cast %127 : vector<8xf32> to vector<8x1xf32>
    %129 = vector.broadcast %128 : vector<8x1xf32> to vector<8x8xf32>
    %130 = arith.divf %126, %129 : vector<8x8xf32>
    %cst_61 = arith.constant dense<0.000000e+00> : vector<8x8xf32>
    %131 = tpu.matmul %130, %114, %cst_61 {dimension_numbers = #tpu.dot_dimension_numbers<[1], [0], [0], [1], [0, 0, 1, 1], [], []>} : vector<8x8xf32>, vector<8x8xf32>, vector<8x8xf32> -> vector<8x8xf32>
    %132 = vector.extract_strided_slice %41 {offsets = [24, 0], sizes = [8, 32], strides = [1, 1]} : vector<32x32xf32> to vector<8x32xf32>
    %cst_62 = arith.constant dense<0.000000e+00> : vector<8x32xf32>
    %133 = tpu.matmul %131, %132, %cst_62 {dimension_numbers = #tpu.dot_dimension_numbers<[1], [0], [0], [1], [0, 0, 1, 1], [], []>} : vector<8x8xf32>, vector<8x32xf32>, vector<8x32xf32> -> vector<8x32xf32>
    %134 = arith.addf %111, %133 : vector<8x32xf32>
    %c0_63 = arith.constant 0 : index
    %c0_64 = arith.constant 0 : index
    %135 = vector.load %arg12[%c0_63, %c0_64] : memref<1x32xf32, #tpu.memory_space<vmem>>, vector<1x32xf32>
    %136 = vector.broadcast %135 : vector<1x32xf32> to vector<8x32xf32>
    %137 = arith.addf %134, %136 : vector<8x32xf32>
    %138 = arith.addf %1, %137 : vector<8x32xf32>
    %c0_65 = arith.constant 0 : index
    %c0_66 = arith.constant 0 : index
    %139 = vector.load %arg13[%c0_65, %c0_66] : memref<1x32xf32, #tpu.memory_space<vmem>>, vector<1x32xf32>
    %c0_67 = arith.constant 0 : index
    %c0_68 = arith.constant 0 : index
    %140 = vector.load %arg14[%c0_67, %c0_68] : memref<1x32xf32, #tpu.memory_space<vmem>>, vector<1x32xf32>
    %cst_69 = arith.constant dense<0.000000e+00> : vector<8xf32>
    %141 = vector.multi_reduction <add>, %138, %cst_69 [1] : vector<8x32xf32> to vector<8xf32>
    %142 = vector.shape_cast %141 : vector<8xf32> to vector<8x1xf32>
    %cst_70 = arith.constant 3.200000e+01 : f32
    %143 = vector.broadcast %cst_70 : f32 to vector<8x1xf32>
    %144 = arith.divf %142, %143 : vector<8x1xf32>
    %145 = vector.broadcast %144 : vector<8x1xf32> to vector<8x32xf32>
    %146 = arith.subf %138, %145 : vector<8x32xf32>
    %147 = arith.mulf %146, %146 : vector<8x32xf32>
    %cst_71 = arith.constant dense<0.000000e+00> : vector<8xf32>
    %148 = vector.multi_reduction <add>, %147, %cst_71 [1] : vector<8x32xf32> to vector<8xf32>
    %149 = vector.shape_cast %148 : vector<8xf32> to vector<8x1xf32>
    %cst_72 = arith.constant 0.0322580636 : f32
    %150 = vector.broadcast %cst_72 : f32 to vector<8x1xf32>
    %151 = arith.mulf %149, %150 : vector<8x1xf32>
    %152 = math.sqrt %151 : vector<8x1xf32>
    %153 = vector.broadcast %139 : vector<1x32xf32> to vector<8x32xf32>
    %154 = arith.mulf %153, %146 : vector<8x32xf32>
    %cst_73 = arith.constant 9.99999997E-7 : f32
    %155 = vector.broadcast %cst_73 : f32 to vector<8x1xf32>
    %156 = arith.addf %152, %155 : vector<8x1xf32>
    %157 = vector.broadcast %156 : vector<8x1xf32> to vector<8x32xf32>
    %158 = arith.divf %154, %157 : vector<8x32xf32>
    %159 = vector.broadcast %140 : vector<1x32xf32> to vector<8x32xf32>
    %160 = arith.addf %158, %159 : vector<8x32xf32>
    %c0_74 = arith.constant 0 : index
    %c0_75 = arith.constant 0 : index
    %161 = vector.load %arg15[%c0_74, %c0_75] : memref<32x64xf32, #tpu.memory_space<vmem>>, vector<32x64xf32>
    %cst_76 = arith.constant dense<0.000000e+00> : vector<8x64xf32>
    %162 = tpu.matmul %160, %161, %cst_76 {dimension_numbers = #tpu.dot_dimension_numbers<[1], [0], [0], [1], [0, 0, 1, 1], [], []>} : vector<8x32xf32>, vector<32x64xf32>, vector<8x64xf32> -> vector<8x64xf32>
    %c0_77 = arith.constant 0 : index
    %c0_78 = arith.constant 0 : index
    %163 = vector.load %arg16[%c0_77, %c0_78] : memref<1x64xf32, #tpu.memory_space<vmem>>, vector<1x64xf32>
    %164 = vector.broadcast %163 : vector<1x64xf32> to vector<8x64xf32>
    %165 = arith.addf %162, %164 : vector<8x64xf32>
    %cst_79 = arith.constant 0.000000e+00 : f32
    %166 = vector.broadcast %cst_79 : f32 to vector<8x64xf32>
    %167 = arith.maximumf %165, %166 : vector<8x64xf32>
    %c0_80 = arith.constant 0 : index
    %c0_81 = arith.constant 0 : index
    %168 = vector.load %arg17[%c0_80, %c0_81] : memref<64x32xf32, #tpu.memory_space<vmem>>, vector<64x32xf32>
    %cst_82 = arith.constant dense<0.000000e+00> : vector<8x32xf32>
    %169 = tpu.matmul %167, %168, %cst_82 {dimension_numbers = #tpu.dot_dimension_numbers<[1], [0], [0], [1], [0, 0, 1, 1], [], []>} : vector<8x64xf32>, vector<64x32xf32>, vector<8x32xf32> -> vector<8x32xf32>
    %c0_83 = arith.constant 0 : index
    %c0_84 = arith.constant 0 : index
    %170 = vector.load %arg18[%c0_83, %c0_84] : memref<1x32xf32, #tpu.memory_space<vmem>>, vector<1x32xf32>
    %171 = vector.broadcast %170 : vector<1x32xf32> to vector<8x32xf32>
    %172 = arith.addf %169, %171 : vector<8x32xf32>
    %173 = arith.addf %138, %172 : vector<8x32xf32>
    %c0_85 = arith.constant 0 : index
    %c0_86 = arith.constant 0 : index
    %c0_87 = arith.constant 0 : index
    %174 = vector.load %arg19[%c0_85, %c0_86, %c0_87] : memref<1x8x32xf32, #tpu.memory_space<vmem>>, vector<1x8x32xf32>
    %175 = vector.shape_cast %174 : vector<1x8x32xf32> to vector<8x32xf32>
    %176 = vector.shape_cast %173 : vector<8x32xf32> to vector<1x8x32xf32>
    tpu.vector_store %arg19[%c0_85, %c0_86, %c0_87], %176 {strides = array<i32>} : memref<1x8x32xf32, #tpu.memory_space<vmem>>, vector<1x8x32xf32>,
    return
  }
  func.func @transform_0(%arg0: i32) -> (i32, i32, i32) {
    %c0_i32 = arith.constant 0 : i32
    %c0_i32_0 = arith.constant 0 : i32
    %c0_i32_1 = arith.constant 0 : i32
    return %arg0, %c0_i32, %c0_i32_0 : i32, i32, i32
  }
  func.func @transform_1(%arg0: i32) -> (i32, i32, i32) {
    %c0_i32 = arith.constant 0 : i32
    %c0_i32_0 = arith.constant 0 : i32
    %c0_i32_1 = arith.constant 0 : i32
    return %arg0, %c0_i32, %c0_i32_0 : i32, i32, i32
  }
  func.func @transform_2(%arg0: i32) -> (i32, i32) {
    %c0_i32 = arith.constant 0 : i32
    %c0_i32_0 = arith.constant 0 : i32
    %c0_i32_1 = arith.constant 0 : i32
    return %c0_i32, %c0_i32_0 : i32, i32
  }
  func.func @transform_3(%arg0: i32) -> (i32, i32) {
    %c0_i32 = arith.constant 0 : i32
    %c0_i32_0 = arith.constant 0 : i32
    %c0_i32_1 = arith.constant 0 : i32
    return %c0_i32, %c0_i32_0 : i32, i32
  }
  func.func @transform_4(%arg0: i32) -> (i32, i32) {
    %c0_i32 = arith.constant 0 : i32
    %c0_i32_0 = arith.constant 0 : i32
    %c0_i32_1 = arith.constant 0 : i32
    return %c0_i32, %c0_i32_0 : i32, i32
  }
  func.func @transform_5(%arg0: i32) -> (i32, i32) {
    %c0_i32 = arith.constant 0 : i32
    %c0_i32_0 = arith.constant 0 : i32
    %c0_i32_1 = arith.constant 0 : i32
    return %c0_i32, %c0_i32_0 : i32, i32
  }
  func.func @transform_6(%arg0: i32) -> (i32, i32) {
    %c0_i32 = arith.constant 0 : i32
    %c0_i32_0 = arith.constant 0 : i32
    %c0_i32_1 = arith.constant 0 : i32
    return %c0_i32, %c0_i32_0 : i32, i32
  }
  func.func @transform_7(%arg0: i32) -> (i32, i32) {
    %c0_i32 = arith.constant 0 : i32
    %c0_i32_0 = arith.constant 0 : i32
    %c0_i32_1 = arith.constant 0 : i32
    return %c0_i32, %c0_i32_0 : i32, i32
  }
  func.func @transform_8(%arg0: i32) -> (i32, i32) {
    %c0_i32 = arith.constant 0 : i32
    %c0_i32_0 = arith.constant 0 : i32
    %c0_i32_1 = arith.constant 0 : i32
    return %c0_i32, %c0_i32_0 : i32, i32
  }
  func.func @transform_9(%arg0: i32) -> (i32, i32) {
    %c0_i32 = arith.constant 0 : i32
    %c0_i32_0 = arith.constant 0 : i32
    %c0_i32_1 = arith.constant 0 : i32
    return %c0_i32, %c0_i32_0 : i32, i32
  }
  func.func @transform_10(%arg0: i32) -> (i32, i32) {
    %c0_i32 = arith.constant 0 : i32
    %c0_i32_0 = arith.constant 0 : i32
    %c0_i32_1 = arith.constant 0 : i32
    return %c0_i32, %c0_i32_0 : i32, i32
  }
  func.func @transform_11(%arg0: i32) -> (i32, i32) {
    %c0_i32 = arith.constant 0 : i32
    %c0_i32_0 = arith.constant 0 : i32
    %c0_i32_1 = arith.constant 0 : i32
    return %c0_i32, %c0_i32_0 : i32, i32
  }
  func.func @transform_12(%arg0: i32) -> (i32, i32) {
    %c0_i32 = arith.constant 0 : i32
    %c0_i32_0 = arith.constant 0 : i32
    %c0_i32_1 = arith.constant 0 : i32
    return %c0_i32, %c0_i32_0 : i32, i32
  }
  func.func @transform_13(%arg0: i32) -> (i32, i32) {
    %c0_i32 = arith.constant 0 : i32
    %c0_i32_0 = arith.constant 0 : i32
    %c0_i32_1 = arith.constant 0 : i32
    return %c0_i32, %c0_i32_0 : i32, i32
  }
  func.func @transform_14(%arg0: i32) -> (i32, i32) {
    %c0_i32 = arith.constant 0 : i32
    %c0_i32_0 = arith.constant 0 : i32
    %c0_i32_1 = arith.constant 0 : i32
    return %c0_i32, %c0_i32_0 : i32, i32
  }
  func.func @transform_15(%arg0: i32) -> (i32, i32) {
    %c0_i32 = arith.constant 0 : i32
    %c0_i32_0 = arith.constant 0 : i32
    %c0_i32_1 = arith.constant 0 : i32
    return %c0_i32, %c0_i32_0 : i32, i32
  }
  func.func @transform_16(%arg0: i32) -> (i32, i32) {
    %c0_i32 = arith.constant 0 : i32
    %c0_i32_0 = arith.constant 0 : i32
    %c0_i32_1 = arith.constant 0 : i32
    return %c0_i32, %c0_i32_0 : i32, i32
  }
  func.func @transform_17(%arg0: i32) -> (i32, i32) {
    %c0_i32 = arith.constant 0 : i32
    %c0_i32_0 = arith.constant 0 : i32
    %c0_i32_1 = arith.constant 0 : i32
    return %c0_i32, %c0_i32_0 : i32, i32
  }
  func.func @transform_18(%arg0: i32) -> (i32, i32, i32) {
    %c0_i32 = arith.constant 0 : i32
    %c0_i32_0 = arith.constant 0 : i32
    %c0_i32_1 = arith.constant 0 : i32
    return %arg0, %c0_i32, %c0_i32_0 : i32, i32, i32
  }
}

</mosaic_0001>

<llo_original>
// kernel: tpu_custom_call.1
$region0: #{tpu_custom_call.1}
  #allocation0 [shape = 'u32[]', space=smem, size = 0x4, offset = 0x4, fixed_abs, tag = 'smem constant byte address 0x4 - core index']
  #allocation1 [shape = 'u32[72,128]{1,0:T(1,128)}', space=vmem, size = 0x9000, scoped, tag = 'internal scratch']
  %s0 = inlined_call_operand.hbm [shape: f32[2,8,32], index: 0, kind: input, shape index: {}]
  %s1 = inlined_call_operand.hbm [shape: f32[2,8,8], index: 1, kind: input, shape index: {}]
  %s2 = inlined_call_operand.vmem [shape: f32[1,32], index: 2, kind: input, shape index: {}]
  %s3 = inlined_call_operand.hbm [shape: f32[1,32], index: 3, kind: input, shape index: {}]
  %s4 = inlined_call_operand.vmem [shape: f32[32,32], index: 4, kind: input, shape index: {}]
  %s5 = inlined_call_operand.vmem [shape: f32[1,32], index: 5, kind: input, shape index: {}]
  %s6 = inlined_call_operand.vmem [shape: f32[32,32], index: 6, kind: input, shape index: {}]
  %s7 = inlined_call_operand.vmem [shape: f32[1,32], index: 7, kind: input, shape index: {}]
  %s8 = inlined_call_operand.vmem [shape: f32[32,32], index: 8, kind: input, shape index: {}]
  %s9 = inlined_call_operand.vmem [shape: f32[1,32], index: 9, kind: input, shape index: {}]
  %s10 = inlined_call_operand.hbm [shape: f32[32,32], index: 10, kind: input, shape index: {}]
  %s11 = inlined_call_operand.vmem [shape: f32[1,32], index: 11, kind: input, shape index: {}]
  %s12 = inlined_call_operand.vmem [shape: f32[1,32], index: 12, kind: input, shape index: {}]
  %s13 = inlined_call_operand.vmem [shape: f32[1,32], index: 13, kind: input, shape index: {}]
  %s14 = inlined_call_operand.hbm [shape: f32[32,64], index: 14, kind: input, shape index: {}]
  %s15 = inlined_call_operand.vmem [shape: f32[1,64], index: 15, kind: input, shape index: {}]
  %s16 = inlined_call_operand.vmem [shape: f32[64,32], index: 16, kind: input, shape index: {}]
  %s17 = inlined_call_operand.vmem [shape: f32[1,32], index: 17, kind: input, shape index: {}]
  %s18 = inlined_call_operand.hbm [shape: f32[2,8,32], index: 18, kind: output, shape index: {}]
  %s19 = sld [smem:[#allocation0]]
  $region125: #{tpu_custom_call.1} parent=0
    _
  %s21 = ssub.s32 1, %s19
  %s22 = scalar_select 0, %s21, %s19
  $region1: #{tpu_custom_call.1} parent=0
    #allocation2 [shape = 'u8[8192]{0}', space=vmem, size = 0x2000, scoped, tag = 'input window, operand 0']
    #allocation3 [shape = 's32[2]{0}', space=sflag, size = 0x8, scoped, tag = 'scoped memory for tpu_custom_call.1']
    #allocation4 [shape = 's32[2]{0}', space=sflag, size = 0x8, scoped, tag = 'scoped memory for tpu_custom_call.1']
    #allocation5 [shape = 'u8[8192]{0}', space=vmem, size = 0x2000, scoped, tag = 'input window, operand 1']
    #allocation6 [shape = 's32[2]{0}', space=sflag, size = 0x8, scoped, tag = 'scoped memory for tpu_custom_call.1']
    #allocation7 [shape = 'u8[512]{0}', space=vmem, size = 0x400, scoped, tag = 'input window, operand 3, single buffered']
    #allocation8 [shape = 'u8[16384]{0}', space=vmem, size = 0x4000, scoped, tag = 'input window, operand 10, single buffered']
    #allocation9 [shape = 's32[1]{0}', space=sflag, size = 0x4, scoped, tag = 'scoped memory for tpu_custom_call.1']
    #allocation10 [shape = 'u8[16384]{0}', space=vmem, size = 0x4000, scoped, tag = 'input window, operand 14, single buffered']
    #allocation11 [shape = 'u8[8192]{0}', space=vmem, size = 0x2000, scoped, tag = 'output window, operand 0']
    %23 = vsyncpa [#allocation3], 0
    %s24 = scalar_lea.sflag [#allocation3], 1
    %25 = vsyncpa %s24, 0
    %26 = vsyncpa [#allocation6], 0
    %s27 = scalar_lea.sflag [#allocation6], 1
    %28 = vsyncpa %s27, 0
    %29 = vsyncpa [#allocation9], 0
    %30 = vsyncpa [#allocation4], 0
    %s31 = scalar_lea.sflag [#allocation4], 1
    %32 = vsyncpa %s31, 0
    loop: start=0, step=1, limit=4
    $region2: #{tpu_custom_call.1} parent=1 // loop_pre_header
      _
    $region3: #{tpu_custom_call.1} parent=1 // loop_header
      %s34 = sphi 0, %s38
      %p35 = scmp.ge.s32.totalorder %s34, 4
      %s44 = sphi 0, %s46
      %s47 = sphi 0, %s44
      %s48 = sphi 0, %s47
      %s64 = sphi 0, %s48
      %s70 = sphi 0, %s72
      %s73 = sphi 0, %s70
      %s74 = sphi 0, %s73
      %s90 = sphi 0, %s74
      %s94 = sphi 0, %s94
      %s96 = sphi 0, %s94
      %s97 = sphi 0, %s96
      %s111 = sphi 0, %s97
      %s115 = sphi 0, %s115
      %s117 = sphi 0, %s115
      %s118 = sphi 0, %s117
      %s132 = sphi 0, %s118
      %s136 = sphi 0, %s136
      %s138 = sphi 0, %s136
      %s139 = sphi 0, %s138
      %s153 = sphi 0, %s139
      %s157 = sphi 0, %s157
      %s159 = sphi 0, %s157
      %s160 = sphi 0, %s159
      %s174 = sphi 0, %s160
      %s178 = sphi 0, %s178
      %s180 = sphi 0, %s178
      %s181 = sphi 0, %s180
      %s195 = sphi 0, %s181
      %s199 = sphi 0, %s199
      %s201 = sphi 0, %s199
      %s202 = sphi 0, %s201
      %s216 = sphi 0, %s202
      %s220 = sphi 0, %s220
      %s222 = sphi 0, %s220
      %s223 = sphi 0, %s222
      %s237 = sphi 0, %s223
      %s241 = sphi 0, %s241
      %s243 = sphi 0, %s241
      %s244 = sphi 0, %s243
      %s258 = sphi 0, %s244
      %s262 = sphi 0, %s262
      %s264 = sphi 0, %s262
      %s265 = sphi 0, %s264
      %s279 = sphi 0, %s265
      %s283 = sphi 0, %s283
      %s285 = sphi 0, %s283
      %s286 = sphi 0, %s285
      %s300 = sphi 0, %s286
      %s304 = sphi 0, %s304
      %s306 = sphi 0, %s304
      %s307 = sphi 0, %s306
      %s321 = sphi 0, %s307
      %s325 = sphi 0, %s325
      %s327 = sphi 0, %s325
      %s328 = sphi 0, %s327
      %s342 = sphi 0, %s328
      %s346 = sphi 0, %s346
      %s348 = sphi 0, %s346
      %s349 = sphi 0, %s348
      %s363 = sphi 0, %s349
      %s367 = sphi 0, %s367
      %s369 = sphi 0, %s367
      %s370 = sphi 0, %s369
      %s384 = sphi 0, %s370
      %s388 = sphi 0, %s388
      %s390 = sphi 0, %s388
      %s391 = sphi 0, %s390
      %s405 = sphi 0, %s391
      %s409 = sphi 0, %s409
      %s411 = sphi 0, %s409
      %s412 = sphi 0, %s411
      %s426 = sphi 0, %s412
      %s432 = sphi 0, %s434
      %s435 = sphi 0, %s432
      %s436 = sphi 0, %s435
      %s452 = sphi 0, %s436
    $region4: #{tpu_custom_call.1} parent=1 // loop_header_branch
      %37 = sbr.rel (%p35) target = $region8
    $region5: #{tpu_custom_call.1} parent=1 // loop_body
      %s39 = ssub.s32 %s34, 1
      %s40 = ssub.s32 %s34, 2
      %s41 = sadd.s32 %s34, 1
      %s42 = ssub.s32 %s34, %s41
      %p43 = scmp.eq.s32.totalorder %s42, 0
      %s45 = sadd.s32 %s44, 1
      %s46 = scalar_select %p43, %s44, %s45
      %p49 = pneg %p43
      %p50 = scmp.eq.s32.totalorder %s34, 1
      %p51 = por %p49, %p50
      %p52 = scmp.ne.s32.totalorder %s44, %s47
      %p53 = scmp.eq.s32.totalorder %s34, 0
      %p54 = por %p52, %p53
      %p55 = scmp.ne.s32.totalorder %s44, %s47
      %p56 = scmp.eq.s32.totalorder %s39, 1
      %p57 = por %p55, %p56
      %p58 = scmp.ne.s32.totalorder %s47, %s48
      %p59 = scmp.eq.s32.totalorder %s39, 0
      %p60 = por %p58, %p59
      %p61 = scmp.ne.s32.totalorder %s47, %s48
      %p62 = scmp.eq.s32.totalorder %s40, 1
      %p63 = por %p61, %p62
      %p65 = scmp.ne.s32.totalorder %s48, %s64
      %p66 = scmp.eq.s32.totalorder %s40, 0
      %p67 = por %p65, %p66
      %s68 = ssub.s32 %s34, %s41
      %p69 = scmp.eq.s32.totalorder %s68, 0
      %s71 = sadd.s32 %s70, 1
      %s72 = scalar_select %p69, %s70, %s71
      %p75 = pneg %p69
      %p76 = scmp.eq.s32.totalorder %s34, 1
      %p77 = por %p75, %p76
      %p78 = scmp.ne.s32.totalorder %s70, %s73
      %p79 = scmp.eq.s32.totalorder %s34, 0
      %p80 = por %p78, %p79
      %p81 = scmp.ne.s32.totalorder %s70, %s73
      %p82 = scmp.eq.s32.totalorder %s39, 1
      %p83 = por %p81, %p82
      %p84 = scmp.ne.s32.totalorder %s73, %s74
      %p85 = scmp.eq.s32.totalorder %s39, 0
      %p86 = por %p84, %p85
      %p87 = scmp.ne.s32.totalorder %s73, %s74
      %p88 = scmp.eq.s32.totalorder %s40, 1
      %p89 = por %p87, %p88
      %p91 = scmp.ne.s32.totalorder %s74, %s90
      %p92 = scmp.eq.s32.totalorder %s40, 0
      %p93 = por %p91, %p92
      %s95 = sadd.s32 %s94, 1
      %p98 = scmp.eq.s32.totalorder %s34, 1
      %p99 = scmp.ne.s32.totalorder %s94, %s96
      %p100 = scmp.eq.s32.totalorder %s34, 0
      %p101 = por %p99, %p100
      %p102 = scmp.ne.s32.totalorder %s94, %s96
      %p103 = scmp.eq.s32.totalorder %s39, 1
      %p104 = por %p102, %p103
      %p105 = scmp.ne.s32.totalorder %s96, %s97
      %p106 = scmp.eq.s32.totalorder %s39, 0
      %p107 = por %p105, %p106
      %p108 = scmp.ne.s32.totalorder %s96, %s97
      %p109 = scmp.eq.s32.totalorder %s40, 1
      %p110 = por %p108, %p109
      %p112 = scmp.ne.s32.totalorder %s97, %s111
      %p113 = scmp.eq.s32.totalorder %s40, 0
      %p114 = por %p112, %p113
      %s116 = sadd.s32 %s115, 1
      %p119 = scmp.eq.s32.totalorder %s34, 1
      %p120 = scmp.ne.s32.totalorder %s115, %s117
      %p121 = scmp.eq.s32.totalorder %s34, 0
      %p122 = por %p120, %p121
      %p123 = scmp.ne.s32.totalorder %s115, %s117
      %p124 = scmp.eq.s32.totalorder %s39, 1
      %p125 = por %p123, %p124
      %p126 = scmp.ne.s32.totalorder %s117, %s118
      %p127 = scmp.eq.s32.totalorder %s39, 0
      %p128 = por %p126, %p127
      %p129 = scmp.ne.s32.totalorder %s117, %s118
      %p130 = scmp.eq.s32.totalorder %s40, 1
      %p131 = por %p129, %p130
      %p133 = scmp.ne.s32.totalorder %s118, %s132
      %p134 = scmp.eq.s32.totalorder %s40, 0
      %p135 = por %p133, %p134
      %s137 = sadd.s32 %s136, 1
      %p140 = scmp.eq.s32.totalorder %s34, 1
      %p141 = scmp.ne.s32.totalorder %s136, %s138
      %p142 = scmp.eq.s32.totalorder %s34, 0
      %p143 = por %p141, %p142
      %p144 = scmp.ne.s32.totalorder %s136, %s138
      %p145 = scmp.eq.s32.totalorder %s39, 1
      %p146 = por %p144, %p145
      %p147 = scmp.ne.s32.totalorder %s138, %s139
      %p148 = scmp.eq.s32.totalorder %s39, 0
      %p149 = por %p147, %p148
      %p150 = scmp.ne.s32.totalorder %s138, %s139
      %p151 = scmp.eq.s32.totalorder %s40, 1
      %p152 = por %p150, %p151
      %p154 = scmp.ne.s32.totalorder %s139, %s153
      %p155 = scmp.eq.s32.totalorder %s40, 0
      %p156 = por %p154, %p155
      %s158 = sadd.s32 %s157, 1
      %p161 = scmp.eq.s32.totalorder %s34, 1
      %p162 = scmp.ne.s32.totalorder %s157, %s159
      %p163 = scmp.eq.s32.totalorder %s34, 0
      %p164 = por %p162, %p163
      %p165 = scmp.ne.s32.totalorder %s157, %s159
      %p166 = scmp.eq.s32.totalorder %s39, 1
      %p167 = por %p165, %p166
      %p168 = scmp.ne.s32.totalorder %s159, %s160
      %p169 = scmp.eq.s32.totalorder %s39, 0
      %p170 = por %p168, %p169
      %p171 = scmp.ne.s32.totalorder %s159, %s160
      %p172 = scmp.eq.s32.totalorder %s40, 1
      %p173 = por %p171, %p172
      %p175 = scmp.ne.s32.totalorder %s160, %s174
      %p176 = scmp.eq.s32.totalorder %s40, 0
      %p177 = por %p175, %p176
      %s179 = sadd.s32 %s178, 1
      %p182 = scmp.eq.s32.totalorder %s34, 1
      %p183 = scmp.ne.s32.totalorder %s178, %s180
      %p184 = scmp.eq.s32.totalorder %s34, 0
      %p185 = por %p183, %p184
      %p186 = scmp.ne.s32.totalorder %s178, %s180
      %p187 = scmp.eq.s32.totalorder %s39, 1
      %p188 = por %p186, %p187
      %p189 = scmp.ne.s32.totalorder %s180, %s181
      %p190 = scmp.eq.s32.totalorder %s39, 0
      %p191 = por %p189, %p190
      %p192 = scmp.ne.s32.totalorder %s180, %s181
      %p193 = scmp.eq.s32.totalorder %s40, 1
      %p194 = por %p192, %p193
      %p196 = scmp.ne.s32.totalorder %s181, %s195
      %p197 = scmp.eq.s32.totalorder %s40, 0
      %p198 = por %p196, %p197
      %s200 = sadd.s32 %s199, 1
      %p203 = scmp.eq.s32.totalorder %s34, 1
      %p204 = scmp.ne.s32.totalorder %s199, %s201
      %p205 = scmp.eq.s32.totalorder %s34, 0
      %p206 = por %p204, %p205
      %p207 = scmp.ne.s32.totalorder %s199, %s201
      %p208 = scmp.eq.s32.totalorder %s39, 1
      %p209 = por %p207, %p208
      %p210 = scmp.ne.s32.totalorder %s201, %s202
      %p211 = scmp.eq.s32.totalorder %s39, 0
      %p212 = por %p210, %p211
      %p213 = scmp.ne.s32.totalorder %s201, %s202
      %p214 = scmp.eq.s32.totalorder %s40, 1
      %p215 = por %p213, %p214
      %p217 = scmp.ne.s32.totalorder %s202, %s216
      %p218 = scmp.eq.s32.totalorder %s40, 0
      %p219 = por %p217, %p218
      %s221 = sadd.s32 %s220, 1
      %p224 = scmp.eq.s32.totalorder %s34, 1
      %p225 = scmp.ne.s32.totalorder %s220, %s222
      %p226 = scmp.eq.s32.totalorder %s34, 0
      %p227 = por %p225, %p226
      %p228 = scmp.ne.s32.totalorder %s220, %s222
      %p229 = scmp.eq.s32.totalorder %s39, 1
      %p230 = por %p228, %p229
      %p231 = scmp.ne.s32.totalorder %s222, %s223
      %p232 = scmp.eq.s32.totalorder %s39, 0
      %p233 = por %p231, %p232
      %p234 = scmp.ne.s32.totalorder %s222, %s223
      %p235 = scmp.eq.s32.totalorder %s40, 1
      %p236 = por %p234, %p235
      %p238 = scmp.ne.s32.totalorder %s223, %s237
      %p239 = scmp.eq.s32.totalorder %s40, 0
      %p240 = por %p238, %p239
      %s242 = sadd.s32 %s241, 1
      %p245 = scmp.eq.s32.totalorder %s34, 1
      %p246 = scmp.ne.s32.totalorder %s241, %s243
      %p247 = scmp.eq.s32.totalorder %s34, 0
      %p248 = por %p246, %p247
      %p249 = scmp.ne.s32.totalorder %s241, %s243
      %p250 = scmp.eq.s32.totalorder %s39, 1
      %p251 = por %p249, %p250
      %p252 = scmp.ne.s32.totalorder %s243, %s244
      %p253 = scmp.eq.s32.totalorder %s39, 0
      %p254 = por %p252, %p253
      %p255 = scmp.ne.s32.totalorder %s243, %s244
      %p256 = scmp.eq.s32.totalorder %s40, 1
      %p257 = por %p255, %p256
      %p259 = scmp.ne.s32.totalorder %s244, %s258
      %p260 = scmp.eq.s32.totalorder %s40, 0
      %p261 = por %p259, %p260
      %s263 = sadd.s32 %s262, 1
      %p266 = scmp.eq.s32.totalorder %s34, 1
      %p267 = scmp.ne.s32.totalorder %s262, %s264
      %p268 = scmp.eq.s32.totalorder %s34, 0
      %p269 = por %p267, %p268
      %p270 = scmp.ne.s32.totalorder %s262, %s264
      %p271 = scmp.eq.s32.totalorder %s39, 1
      %p272 = por %p270, %p271
      %p273 = scmp.ne.s32.totalorder %s264, %s265
      %p274 = scmp.eq.s32.totalorder %s39, 0
      %p275 = por %p273, %p274
      %p276 = scmp.ne.s32.totalorder %s264, %s265
      %p277 = scmp.eq.s32.totalorder %s40, 1
      %p278 = por %p276, %p277
      %p280 = scmp.ne.s32.totalorder %s265, %s279
      %p281 = scmp.eq.s32.totalorder %s40, 0
      %p282 = por %p280, %p281
      %s284 = sadd.s32 %s283, 1
      %p287 = scmp.eq.s32.totalorder %s34, 1
      %p288 = scmp.ne.s32.totalorder %s283, %s285
      %p289 = scmp.eq.s32.totalorder %s34, 0
      %p290 = por %p288, %p289
      %p291 = scmp.ne.s32.totalorder %s283, %s285
      %p292 = scmp.eq.s32.totalorder %s39, 1
      %p293 = por %p291, %p292
      %p294 = scmp.ne.s32.totalorder %s285, %s286
      %p295 = scmp.eq.s32.totalorder %s39, 0
      %p296 = por %p294, %p295
      %p297 = scmp.ne.s32.totalorder %s285, %s286
      %p298 = scmp.eq.s32.totalorder %s40, 1
      %p299 = por %p297, %p298
      %p301 = scmp.ne.s32.totalorder %s286, %s300
      %p302 = scmp.eq.s32.totalorder %s40, 0
      %p303 = por %p301, %p302
      %s305 = sadd.s32 %s304, 1
      %p308 = scmp.eq.s32.totalorder %s34, 1
      %p309 = scmp.ne.s32.totalorder %s304, %s306
      %p310 = scmp.eq.s32.totalorder %s34, 0
      %p311 = por %p309, %p310
      %p312 = scmp.ne.s32.totalorder %s304, %s306
      %p313 = scmp.eq.s32.totalorder %s39, 1
      %p314 = por %p312, %p313
      %p315 = scmp.ne.s32.totalorder %s306, %s307
      %p316 = scmp.eq.s32.totalorder %s39, 0
      %p317 = por %p315, %p316
      %p318 = scmp.ne.s32.totalorder %s306, %s307
      %p319 = scmp.eq.s32.totalorder %s40, 1
      %p320 = por %p318, %p319
      %p322 = scmp.ne.s32.totalorder %s307, %s321
      %p323 = scmp.eq.s32.totalorder %s40, 0
      %p324 = por %p322, %p323
      %s326 = sadd.s32 %s325, 1
      %p329 = scmp.eq.s32.totalorder %s34, 1
      %p330 = scmp.ne.s32.totalorder %s325, %s327
      %p331 = scmp.eq.s32.totalorder %s34, 0
      %p332 = por %p330, %p331
      %p333 = scmp.ne.s32.totalorder %s325, %s327
      %p334 = scmp.eq.s32.totalorder %s39, 1
      %p335 = por %p333, %p334
      %p336 = scmp.ne.s32.totalorder %s327, %s328
      %p337 = scmp.eq.s32.totalorder %s39, 0
      %p338 = por %p336, %p337
      %p339 = scmp.ne.s32.totalorder %s327, %s328
      %p340 = scmp.eq.s32.totalorder %s40, 1
      %p341 = por %p339, %p340
      %p343 = scmp.ne.s32.totalorder %s328, %s342
      %p344 = scmp.eq.s32.totalorder %s40, 0
      %p345 = por %p343, %p344
      %s347 = sadd.s32 %s346, 1
      %p350 = scmp.eq.s32.totalorder %s34, 1
      %p351 = scmp.ne.s32.totalorder %s346, %s348
      %p352 = scmp.eq.s32.totalorder %s34, 0
      %p353 = por %p351, %p352
      %p354 = scmp.ne.s32.totalorder %s346, %s348
      %p355 = scmp.eq.s32.totalorder %s39, 1
      %p356 = por %p354, %p355
      %p357 = scmp.ne.s32.totalorder %s348, %s349
      %p358 = scmp.eq.s32.totalorder %s39, 0
      %p359 = por %p357, %p358
      %p360 = scmp.ne.s32.totalorder %s348, %s349
      %p361 = scmp.eq.s32.totalorder %s40, 1
      %p362 = por %p360, %p361
      %p364 = scmp.ne.s32.totalorder %s349, %s363
      %p365 = scmp.eq.s32.totalorder %s40, 0
      %p366 = por %p364, %p365
      %s368 = sadd.s32 %s367, 1
      %p371 = scmp.eq.s32.totalorder %s34, 1
      %p372 = scmp.ne.s32.totalorder %s367, %s369
      %p373 = scmp.eq.s32.totalorder %s34, 0
      %p374 = por %p372, %p373
      %p375 = scmp.ne.s32.totalorder %s367, %s369
      %p376 = scmp.eq.s32.totalorder %s39, 1
      %p377 = por %p375, %p376
      %p378 = scmp.ne.s32.totalorder %s369, %s370
      %p379 = scmp.eq.s32.totalorder %s39, 0
      %p380 = por %p378, %p379
      %p381 = scmp.ne.s32.totalorder %s369, %s370
      %p382 = scmp.eq.s32.totalorder %s40, 1
      %p383 = por %p381, %p382
      %p385 = scmp.ne.s32.totalorder %s370, %s384
      %p386 = scmp.eq.s32.totalorder %s40, 0
      %p387 = por %p385, %p386
      %s389 = sadd.s32 %s388, 1
      %p392 = scmp.eq.s32.totalorder %s34, 1
      %p393 = scmp.ne.s32.totalorder %s388, %s390
      %p394 = scmp.eq.s32.totalorder %s34, 0
      %p395 = por %p393, %p394
      %p396 = scmp.ne.s32.totalorder %s388, %s390
      %p397 = scmp.eq.s32.totalorder %s39, 1
      %p398 = por %p396, %p397
      %p399 = scmp.ne.s32.totalorder %s390, %s391
      %p400 = scmp.eq.s32.totalorder %s39, 0
      %p401 = por %p399, %p400
      %p402 = scmp.ne.s32.totalorder %s390, %s391
      %p403 = scmp.eq.s32.totalorder %s40, 1
      %p404 = por %p402, %p403
      %p406 = scmp.ne.s32.totalorder %s391, %s405
      %p407 = scmp.eq.s32.totalorder %s40, 0
      %p408 = por %p406, %p407
      %s410 = sadd.s32 %s409, 1
      %p413 = scmp.eq.s32.totalorder %s34, 1
      %p414 = scmp.ne.s32.totalorder %s409, %s411
      %p415 = scmp.eq.s32.totalorder %s34, 0
      %p416 = por %p414, %p415
      %p417 = scmp.ne.s32.totalorder %s409, %s411
      %p418 = scmp.eq.s32.totalorder %s39, 1
      %p419 = por %p417, %p418
      %p420 = scmp.ne.s32.totalorder %s411, %s412
      %p421 = scmp.eq.s32.totalorder %s39, 0
      %p422 = por %p420, %p421
      %p423 = scmp.ne.s32.totalorder %s411, %s412
      %p424 = scmp.eq.s32.totalorder %s40, 1
      %p425 = por %p423, %p424
      %p427 = scmp.ne.s32.totalorder %s412, %s426
      %p428 = scmp.eq.s32.totalorder %s40, 0
      %p429 = por %p427, %p428
      %s430 = ssub.s32 %s34, %s41
      %p431 = scmp.eq.s32.totalorder %s430, 0
      %s433 = sadd.s32 %s432, 1
      %s434 = scalar_select %p431, %s432, %s433
      %p437 = pneg %p431
      %p438 = scmp.eq.s32.totalorder %s34, 1
      %p439 = por %p437, %p438
      %p440 = scmp.ne.s32.totalorder %s432, %s435
      %p441 = scmp.eq.s32.totalorder %s34, 0
      %p442 = por %p440, %p441
      %p443 = scmp.ne.s32.totalorder %s432, %s435
      %p444 = scmp.eq.s32.totalorder %s39, 1
      %p445 = por %p443, %p444
      %p446 = scmp.ne.s32.totalorder %s435, %s436
      %p447 = scmp.eq.s32.totalorder %s39, 0
      %p448 = por %p446, %p447
      %p449 = scmp.ne.s32.totalorder %s435, %s436
      %p450 = scmp.eq.s32.totalorder %s40, 1
      %p451 = por %p449, %p450
      %p453 = scmp.ne.s32.totalorder %s436, %s452
      %p454 = scmp.eq.s32.totalorder %s40, 0
      %p455 = por %p453, %p454
      %p456 = scmp.le.s32.totalorder 1, %s34
      %p457 = scmp.lt.s32.totalorder %s34, 3
      %p458 = pnand %p456, %p457
      %p459 = pneg %p458
      // Predicated region
      $region9: #{tpu_custom_call.1} parent=5 // pred_check
        _
      $region10: #{tpu_custom_call.1} parent=5 // pred_check_branch
        %461 = sbr.rel (%p458) target = $region12
      $region11: #{tpu_custom_call.1} parent=5 // pred_region
        %s462 = ssub.s32 %s34, 1
        // Predicated region
        $region13: #{tpu_custom_call.1} parent=11 // pred_check
          %p463 = pneg %p107
        $region14: #{tpu_custom_call.1} parent=11 // pred_check_branch
          %465 = sbr.rel (%p463) target = $region16
        $region15: #{tpu_custom_call.1} parent=11 // pred_region
          _
        $region16: #{tpu_custom_call.1} parent=11 // pred_fallthru
          _
        // Predicated region
        $region17: #{tpu_custom_call.1} parent=11 // pred_check
          %p466 = pneg %p128
        $region18: #{tpu_custom_call.1} parent=11 // pred_check_branch
          %468 = sbr.rel (%p466) target = $region20
        $region19: #{tpu_custom_call.1} parent=11 // pred_region
          %470 = vsyncadd [#allocation6], 0
          %s472 = sshll.u32 %s3, 4
          %s473 = int_to_ptr.hbm [resolvable:$true] %s472
          %s474 = sshll.u32 [#allocation7], 4
          %s475 = int_to_ptr.vmem [resolvable:$true] %s474
          %477 = dma.hbm_to_vmem [thread:$0]  %s473, 16, %s475, [#allocation6]
        $region20: #{tpu_custom_call.1} parent=11 // pred_fallthru
          _
        // Predicated region
        $region21: #{tpu_custom_call.1} parent=11 // pred_check
          %p478 = pneg %p149
        $region22: #{tpu_custom_call.1} parent=11 // pred_check_branch
          %480 = sbr.rel (%p478) target = $region24
        $region23: #{tpu_custom_call.1} parent=11 // pred_region
          _
        $region24: #{tpu_custom_call.1} parent=11 // pred_fallthru
          _
        // Predicated region
        $region25: #{tpu_custom_call.1} parent=11 // pred_check
          %p481 = pneg %p170
        $region26: #{tpu_custom_call.1} parent=11 // pred_check_branch
          %483 = sbr.rel (%p481) target = $region28
        $region27: #{tpu_custom_call.1} parent=11 // pred_region
          _
        $region28: #{tpu_custom_call.1} parent=11 // pred_fallthru
          _
        // Predicated region
        $region29: #{tpu_custom_call.1} parent=11 // pred_check
          %p484 = pneg %p191
        $region30: #{tpu_custom_call.1} parent=11 // pred_check_branch
          %486 = sbr.rel (%p484) target = $region32
        $region31: #{tpu_custom_call.1} parent=11 // pred_region
          _
        $region32: #{tpu_custom_call.1} parent=11 // pred_fallthru
          _
        // Predicated region
        $region33: #{tpu_custom_call.1} parent=11 // pred_check
          %p487 = pneg %p212
        $region34: #{tpu_custom_call.1} parent=11 // pred_check_branch
          %489 = sbr.rel (%p487) target = $region36
        $region35: #{tpu_custom_call.1} parent=11 // pred_region
          _
        $region36: #{tpu_custom_call.1} parent=11 // pred_fallthru
          _
        // Predicated region
        $region37: #{tpu_custom_call.1} parent=11 // pred_check
          %p490 = pneg %p233
        $region38: #{tpu_custom_call.1} parent=11 // pred_check_branch
          %492 = sbr.rel (%p490) target = $region40
        $region39: #{tpu_custom_call.1} parent=11 // pred_region
          _
        $region40: #{tpu_custom_call.1} parent=11 // pred_fallthru
          _
        // Predicated region
        $region41: #{tpu_custom_call.1} parent=11 // pred_check
          %p493 = pneg %p254
        $region42: #{tpu_custom_call.1} parent=11 // pred_check_branch
          %495 = sbr.rel (%p493) target = $region44
        $region43: #{tpu_custom_call.1} parent=11 // pred_region
          _
        $region44: #{tpu_custom_call.1} parent=11 // pred_fallthru
          _
        // Predicated region
        $region45: #{tpu_custom_call.1} parent=11 // pred_check
          %p496 = pneg %p275
        $region46: #{tpu_custom_call.1} parent=11 // pred_check_branch
          %498 = sbr.rel (%p496) target = $region48
        $region47: #{tpu_custom_call.1} parent=11 // pred_region
          %500 = vsyncadd [#allocation9], 0
          %s501 = sshll.u32 %s10, 4
          %s502 = int_to_ptr.hbm [resolvable:$true] %s501
          %s503 = sshll.u32 [#allocation8], 4
          %s504 = int_to_ptr.vmem [resolvable:$true] %s503
          %509 = dma.hbm_to_vmem [thread:$0]  %s502, 512, %s504, [#allocation9], 128, 128, 8
        $region48: #{tpu_custom_call.1} parent=11 // pred_fallthru
          _
        // Predicated region
        $region49: #{tpu_custom_call.1} parent=11 // pred_check
          %p510 = pneg %p296
        $region50: #{tpu_custom_call.1} parent=11 // pred_check_branch
          %512 = sbr.rel (%p510) target = $region52
        $region51: #{tpu_custom_call.1} parent=11 // pred_region
          _
        $region52: #{tpu_custom_call.1} parent=11 // pred_fallthru
          _
        // Predicated region
        $region53: #{tpu_custom_call.1} parent=11 // pred_check
          %p513 = pneg %p317
        $region54: #{tpu_custom_call.1} parent=11 // pred_check_branch
          %515 = sbr.rel (%p513) target = $region56
        $region55: #{tpu_custom_call.1} parent=11 // pred_region
          _
        $region56: #{tpu_custom_call.1} parent=11 // pred_fallthru
          _
        // Predicated region
        $region57: #{tpu_custom_call.1} parent=11 // pred_check
          %p516 = pneg %p338
        $region58: #{tpu_custom_call.1} parent=11 // pred_check_branch
          %518 = sbr.rel (%p516) target = $region60
        $region59: #{tpu_custom_call.1} parent=11 // pred_region
          _
        $region60: #{tpu_custom_call.1} parent=11 // pred_fallthru
          _
        // Predicated region
        $region61: #{tpu_custom_call.1} parent=11 // pred_check
          %p519 = pneg %p359
        $region62: #{tpu_custom_call.1} parent=11 // pred_check_branch
          %521 = sbr.rel (%p519) target = $region64
        $region63: #{tpu_custom_call.1} parent=11 // pred_region
          %523 = vsyncadd [#allocation9], 0
          %s524 = sshll.u32 %s14, 4
          %s525 = int_to_ptr.hbm [resolvable:$true] %s524
          %s526 = sshll.u32 [#allocation10], 4
          %s527 = int_to_ptr.vmem [resolvable:$true] %s526
          %532 = dma.hbm_to_vmem [thread:$0]  %s525, 512, %s527, [#allocation9], 128, 128, 8
        $region64: #{tpu_custom_call.1} parent=11 // pred_fallthru
          _
        // Predicated region
        $region65: #{tpu_custom_call.1} parent=11 // pred_check
          %p533 = pneg %p380
        $region66: #{tpu_custom_call.1} parent=11 // pred_check_branch
          %535 = sbr.rel (%p533) target = $region68
        $region67: #{tpu_custom_call.1} parent=11 // pred_region
          _
        $region68: #{tpu_custom_call.1} parent=11 // pred_fallthru
          _
        // Predicated region
        $region69: #{tpu_custom_call.1} parent=11 // pred_check
          %p536 = pneg %p401
        $region70: #{tpu_custom_call.1} parent=11 // pred_check_branch
          %538 = sbr.rel (%p536) target = $region72
        $region71: #{tpu_custom_call.1} parent=11 // pred_region
          _
        $region72: #{tpu_custom_call.1} parent=11 // pred_fallthru
          _
        // Predicated region
        $region73: #{tpu_custom_call.1} parent=11 // pred_check
          %p539 = pneg %p422
        $region74: #{tpu_custom_call.1} parent=11 // pred_check_branch
          %541 = sbr.rel (%p539) target = $region76
        $region75: #{tpu_custom_call.1} parent=11 // pred_region
          _
        $region76: #{tpu_custom_call.1} parent=11 // pred_fallthru
          _
      $region12: #{tpu_custom_call.1} parent=5 // pred_fallthru
        _
      %p542 = scmp.lt.s32.totalorder %s34, 2
      // Predicated region
      $region77: #{tpu_custom_call.1} parent=5 // pred_check
        %p543 = pneg %p542
      $region78: #{tpu_custom_call.1} parent=5 // pred_check_branch
        %545 = sbr.rel (%p543) target = $region80
      $region79: #{tpu_custom_call.1} parent=5 // pred_region
        // Predicated region
        $region81: #{tpu_custom_call.1} parent=79 // pred_check
          %p546 = pneg %p54
        $region82: #{tpu_custom_call.1} parent=79 // pred_check_branch
          %548 = sbr.rel (%p546) target = $region84
        $region83: #{tpu_custom_call.1} parent=79 // pred_region
          %s549 = sand.u32 %s44, 1
          %s550 = scalar_lea.sflag [#allocation3], %s549
          %s551 = sand.u32 %s44, 1
          %s552 = smul.addr %s551, 8
          %s553 = scalar_lea.vmem [#allocation2], %s552
          %555 = vsyncadd %s550, 0
          %s556 = smul.addr %s34, 8
          %s557 = scalar_lea.hbm %s0, %s556
          %s559 = sshll.u32 %s557, 4
          %s560 = int_to_ptr.hbm [resolvable:$true] %s559
          %s561 = sshll.u32 %s553, 4
          %s562 = int_to_ptr.vmem [resolvable:$true] %s561
          %564 = dma.hbm_to_vmem [thread:$0]  %s560, 128, %s562, %s550
        $region84: #{tpu_custom_call.1} parent=79 // pred_fallthru
          _
        // Predicated region
        $region85: #{tpu_custom_call.1} parent=79 // pred_check
          %p565 = pneg %p80
        $region86: #{tpu_custom_call.1} parent=79 // pred_check_branch
          %567 = sbr.rel (%p565) target = $region88
        $region87: #{tpu_custom_call.1} parent=79 // pred_region
          %s568 = sand.u32 %s34, 1
          %s569 = scalar_lea.sflag [#allocation6], %s568
          %s570 = sand.u32 %s70, 1
          %s571 = smul.addr %s570, 8
          %s572 = scalar_lea.vmem [#allocation5], %s571
          %574 = vsyncadd %s569, 0
          %s575 = smul.addr %s34, 8
          %s576 = scalar_lea.hbm %s1, %s575
          %s578 = sshll.u32 %s576, 4
          %s579 = int_to_ptr.hbm [resolvable:$true] %s578
          %s580 = sshll.u32 %s572, 4
          %s581 = int_to_ptr.vmem [resolvable:$true] %s580
          %583 = dma.hbm_to_vmem [thread:$0]  %s579, 128, %s581, %s569
        $region88: #{tpu_custom_call.1} parent=79 // pred_fallthru
          _
      $region80: #{tpu_custom_call.1} parent=5 // pred_fallthru
        _
      %p584 = scmp.le.s32.totalorder 1, %s34
      %p585 = scmp.lt.s32.totalorder %s34, 3
      %p586 = pnand %p584, %p585
      %p587 = pneg %p586
      // Predicated region
      $region89: #{tpu_custom_call.1} parent=5 // pred_check
        _
      $region90: #{tpu_custom_call.1} parent=5 // pred_check_branch
        %589 = sbr.rel (%p586) target = $region92
      $region91: #{tpu_custom_call.1} parent=5 // pred_region
        %s590 = ssub.s32 %s34, 1
        %s591 = sand.u32 %s47, 1
        %s592 = scalar_lea.sflag [#allocation3], %s591
        %s593 = sand.u32 %s47, 1
        %s594 = smul.addr %s593, 8
        %s595 = scalar_lea.vmem [#allocation2], %s594
        // Predicated region
        $region93: #{tpu_custom_call.1} parent=91 // pred_check
          %p596 = pneg %p60
        $region94: #{tpu_custom_call.1} parent=91 // pred_check_branch
          %598 = sbr.rel (%p596) target = $region96
        $region95: #{tpu_custom_call.1} parent=91 // pred_region
          %600 = dma.done %s592, 128
        $region96: #{tpu_custom_call.1} parent=91 // pred_fallthru
          _
        %s601 = sand.u32 %s39, 1
        %s602 = scalar_lea.sflag [#allocation6], %s601
        %s603 = sand.u32 %s73, 1
        %s604 = smul.addr %s603, 8
        %s605 = scalar_lea.vmem [#allocation5], %s604
        // Predicated region
        $region97: #{tpu_custom_call.1} parent=91 // pred_check
          %p606 = pneg %p86
        $region98: #{tpu_custom_call.1} parent=91 // pred_check_branch
          %608 = sbr.rel (%p606) target = $region100
        $region99: #{tpu_custom_call.1} parent=91 // pred_region
          %610 = dma.done %s602, 128
        $region100: #{tpu_custom_call.1} parent=91 // pred_fallthru
          _
        // Predicated region
        $region101: #{tpu_custom_call.1} parent=91 // pred_check
          %p611 = pneg %p128
        $region102: #{tpu_custom_call.1} parent=91 // pred_check_branch
          %613 = sbr.rel (%p611) target = $region104
        $region103: #{tpu_custom_call.1} parent=91 // pred_region
          %615 = dma.done [#allocation6], 16
        $region104: #{tpu_custom_call.1} parent=91 // pred_fallthru
          _
        // Predicated region
        $region105: #{tpu_custom_call.1} parent=91 // pred_check
          %p616 = pneg %p275
        $region106: #{tpu_custom_call.1} parent=91 // pred_check_branch
          %618 = sbr.rel (%p616) target = $region108
        $region107: #{tpu_custom_call.1} parent=91 // pred_region
          %620 = dma.done [#allocation9], 512
        $region108: #{tpu_custom_call.1} parent=91 // pred_fallthru
          _
        // Predicated region
        $region109: #{tpu_custom_call.1} parent=91 // pred_check
          %p621 = pneg %p359
        $region110: #{tpu_custom_call.1} parent=91 // pred_check_branch
          %623 = sbr.rel (%p621) target = $region112
        $region111: #{tpu_custom_call.1} parent=91 // pred_region
          %625 = dma.done [#allocation9], 512
        $region112: #{tpu_custom_call.1} parent=91 // pred_fallthru
          _
        %s626 = sand.u32 %s47, 1
        %s627 = scalar_lea.sflag [#allocation3], %s626
        %s628 = sand.u32 %s47, 1
        %s629 = smul.addr %s628, 8
        %s630 = scalar_lea.vmem [#allocation2], %s629
        %p631 = pneg %p60
        %p632 = pneg %p57
        %s633 = sand.u32 %s39, 1
        %s634 = scalar_lea.sflag [#allocation6], %s633
        %s635 = sand.u32 %s73, 1
        %s636 = smul.addr %s635, 8
        %s637 = scalar_lea.vmem [#allocation5], %s636
        %p638 = pneg %p86
        %p639 = pneg %p83
        %p640 = pneg %p107
        %p641 = pneg %p104
        %p642 = pneg %p128
        %p643 = pneg %p125
        %p644 = pneg %p149
        %p645 = pneg %p146
        %p646 = pneg %p170
        %p647 = pneg %p167
        %p648 = pneg %p191
        %p649 = pneg %p188
        %p650 = pneg %p212
        %p651 = pneg %p209
        %p652 = pneg %p233
        %p653 = pneg %p230
        %p654 = pneg %p254
        %p655 = pneg %p251
        %p656 = pneg %p275
        %p657 = pneg %p272
        %p658 = pneg %p296
        %p659 = pneg %p293
        %p660 = pneg %p317
        %p661 = pneg %p314
        %p662 = pneg %p338
        %p663 = pneg %p335
        %p664 = pneg %p359
        %p665 = pneg %p356
        %p666 = pneg %p380
        %p667 = pneg %p377
        %p668 = pneg %p401
        %p669 = pneg %p398
        %p670 = pneg %p422
        %p671 = pneg %p419
        %p672 = pneg %p448
        %p673 = pneg %p445
        %s674 = sand.u32 %s435, 1
        %s675 = scalar_lea.sflag [#allocation4], %s674
        %s676 = sand.u32 %s435, 1
        %s677 = smul.addr %s676, 8
        %s678 = scalar_lea.vmem [#allocation11], %s677
        %v679 = vld [vmem:[%s595] sm:$0xff]
        %v680 = vld [vmem:[%s605] sm:$0xff]
        %v681 = vld [vmem:[%s2] sm:$0x1]
        %v682 = vld [vmem:[#allocation7] sm:$0x1]
        %vm683 = vcmask 261120
        %v684 = vsel %vm683, %v679, 0.0
        %685 = vadd.xlane.f32.xlu0 %v684
        %v686 = vpop.xlane.xlu0 %685
        %v687 = vrcp.pop 32.0
        %v688 = vmul.f32 32.0, %v687
        %v689 = vsub.f32 1.0, %v688
        %v690 = vmul.f32 %v687, %v689
        %v691 = vadd.f32 %v687, %v690
        %vm692 = vweird.f32 %v687
        %v693 = vsel %vm692, %v687, %v691
        %v694 = vmul.f32 %v686, %v693
        %v695 = vsub.f32 %v679, %v694
        %v696 = vmul.f32 %v695, %v695
        %v697 = vsel %vm683, %v696, 0.0
        %698 = vadd.xlane.f32.xlu0 %v697
        %v699 = vpop.xlane.xlu0 %698
        %v700 = vmul.f32 %v699, 0.032258064
        %v701 = vrsqrt.pop %v700
        %v702 = vmul.f32 %v701, %v700
        %v703 = vmul.f32 %v702, %v701
        %v704 = vmul.f32 0.5, %v703
        %v705 = vsub.f32 1.5, %v704
        %v706 = vmul.f32 %v701, %v705
        %v707 = vmul.f32 %v700, %v706
        %vm708 = vcmp.eq.f32.partialorder %v700, inf
        %v709 = vsel %vm708, %v700, %v707
        %vm710 = vcmp.eq.f32.partialorder %v700, 0.0
        %v711 = vand.u32 %v700, 2147483648
        %v712 = vsel %vm710, %v711, %v709
        %v714 = vperm.slane %v681, 0
        %v716 = vmul.f32 %v714, %v695
        %v717 = vadd.f32 %v712, 1e-06
        %v718 = vrcp.pop %v717
        %v719 = vmul.f32 %v717, %v718
        %v720 = vsub.f32 1.0, %v719
        %v721 = vmul.f32 %v718, %v720
        %v722 = vadd.f32 %v718, %v721
        %vm723 = vweird.f32 %v717
        %vm724 = vweird.f32 %v718
        %vm725 = vmor %vm723, %vm724
        %v726 = vsel %vm725, %v718, %v722
        %v727 = vand.u32 2147483647, %v717
        %vm728 = vcmp.eq.f32.partialorder %v727, 8.507059e+37
        %v729 = vand.u32 %v717, 2147483648
        %v730 = vor.u32 1.1754944e-38, %v729
        %v731 = vsel %vm728, %v730, %v726
        %v732 = vmul.f32 %v716, %v731
        %v734 = vperm.slane %v682, 0
        %v736 = vadd.f32 %v732, %v734
        %v737 = vld [vmem:[%s4] sm:$0xff]
        %v738 = vld [vmem:[%s4 + $0x8] sm:$0xff]
        %v739 = vld [vmem:[%s4 + $0x10] sm:$0xff]
        %v740 = vld [vmem:[%s4 + $0x18] sm:$0xff]
        %v741 = vld [vmem:[%s5] sm:$0x1]
        %v743 = vperm.slane %v741, 0
        %v746 = vsel %vm683, %v736, 0
        %748 = vmatpush.msra.mxu0 0.0
        %749 = vmatpush.msra.mxu0 0.0
        %750 = vmatpush.msra.mxu0 0.0
        %751 = vmatpush.msra.mxu0 0.0
        %752 = vmatpush.msra.mxu0 0.0
        %753 = vmatpush.msra.mxu0 0.0
        %754 = vmatpush.msra.mxu0 0.0
        %755 = vmatpush.msra.mxu0 0.0
        %756 = vmatpush.msra.mxu0 0.0
        %757 = vmatpush.msra.mxu0 0.0
        %758 = vmatpush.msra.mxu0 0.0
        %759 = vmatpush.msra.mxu0 0.0
        %760 = vmatpush.msra.mxu0 %v740
        %761 = vmatpush.msra.mxu0 %v739
        %762 = vmatpush.msra.mxu0 %v738
        %763 = vmatpush.msra.mxu0 %v737
        %764 = vmatmul.f32.gmra.mxu0 %v746
        %v765 = vpop.f32.mrf.mxu0
        %v766 = vadd.f32 %v743, %v765
        %767 = vdwg.mxu0
        %v768 = vld [vmem:[%s6] sm:$0xff]
        %v769 = vld [vmem:[%s6 + $0x8] sm:$0xff]
        %v770 = vld [vmem:[%s6 + $0x10] sm:$0xff]
        %v771 = vld [vmem:[%s6 + $0x18] sm:$0xff]
        %v772 = vld [vmem:[%s7] sm:$0x1]
        %v774 = vperm.slane %v772, 0
        %776 = vmatpush.msra.mxu0 0.0
        %777 = vmatpush.msra.mxu0 0.0
        %778 = vmatpush.msra.mxu0 0.0
        %779 = vmatpush.msra.mxu0 0.0
        %780 = vmatpush.msra.mxu0 0.0
        %781 = vmatpush.msra.mxu0 0.0
        %782 = vmatpush.msra.mxu0 0.0
        %783 = vmatpush.msra.mxu0 0.0
        %784 = vmatpush.msra.mxu0 0.0
        %785 = vmatpush.msra.mxu0 0.0
        %786 = vmatpush.msra.mxu0 0.0
        %787 = vmatpush.msra.mxu0 0.0
        %788 = vmatpush.msra.mxu0 %v771
        %789 = vmatpush.msra.mxu0 %v770
        %790 = vmatpush.msra.mxu0 %v769
        %791 = vmatpush.msra.mxu0 %v768
        %792 = vmatmul.f32.gmra.mxu0 %v746
        %v793 = vpop.f32.mrf.mxu0
        %v794 = vadd.f32 %v774, %v793
        %795 = vdwg.mxu0
        %v796 = vld [vmem:[%s8] sm:$0xff]
        %v797 = vld [vmem:[%s8 + $0x8] sm:$0xff]
        %v798 = vld [vmem:[%s8 + $0x10] sm:$0xff]
        %v799 = vld [vmem:[%s8 + $0x18] sm:$0xff]
        %v800 = vld [vmem:[%s9] sm:$0x1]
        %v802 = vperm.slane %v800, 0
        %804 = vmatpush.msra.mxu0 0.0
        %805 = vmatpush.msra.mxu0 0.0
        %806 = vmatpush.msra.mxu0 0.0
        %807 = vmatpush.msra.mxu0 0.0
        %808 = vmatpush.msra.mxu0 0.0
        %809 = vmatpush.msra.mxu0 0.0
        %810 = vmatpush.msra.mxu0 0.0
        %811 = vmatpush.msra.mxu0 0.0
        %812 = vmatpush.msra.mxu0 0.0
        %813 = vmatpush.msra.mxu0 0.0
        %814 = vmatpush.msra.mxu0 0.0
        %815 = vmatpush.msra.mxu0 0.0
        %816 = vmatpush.msra.mxu0 %v799
        %817 = vmatpush.msra.mxu0 %v798
        %818 = vmatpush.msra.mxu0 %v797
        %819 = vmatpush.msra.mxu0 %v796
        %820 = vmatmul.f32.gmra.mxu0 %v746
        %v821 = vpop.f32.mrf.mxu0
        %v822 = vadd.f32 %v802, %v821
        %823 = vdwg.mxu0
        %v824 = vld [vmem:[#allocation8] sm:$0xff]
        %v825 = vld [vmem:[#allocation8 + $0x8] sm:$0xff]
        %v826 = vld [vmem:[#allocation8 + $0x10] sm:$0xff]
        %v827 = vld [vmem:[#allocation8 + $0x18] sm:$0xff]
        %vm828 = vcmask 64512
        %v830 = vsel %vm828, %v766, 0
        %v833 = vsel %vm828, %v794, 0
        %835 = vmatpush.xpose.msra.mxu0 0.0
        %836 = vmatpush.xpose.msra.mxu0 0.0
        %837 = vmatpush.xpose.msra.mxu0 0.0
        %838 = vmatpush.xpose.msra.mxu0 0.0
        %839 = vmatpush.xpose.msra.mxu0 0.0
        %840 = vmatpush.xpose.msra.mxu0 0.0
        %841 = vmatpush.xpose.msra.mxu0 0.0
        %842 = vmatpush.xpose.msra.mxu0 0.0
        %843 = vmatpush.xpose.msra.mxu0 0.0
        %844 = vmatpush.xpose.msra.mxu0 0.0
        %845 = vmatpush.xpose.msra.mxu0 0.0
        %846 = vmatpush.xpose.msra.mxu0 0.0
        %847 = vmatpush.xpose.msra.mxu0 0.0
        %848 = vmatpush.xpose.msra.mxu0 0.0
        %849 = vmatpush.xpose.msra.mxu0 0.0
        %850 = vmatpush.xpose.msra.mxu0 %v833
        %851 = vmatmul.f32.gmra.mxu0 %v830
        %v852 = vpop.f32.mrf.mxu0
        %v853 = vadd.f32 0.0, %v852
        %854 = vdwg.mxu0
        %v855 = vmul.f32 %v853, 0.35355338
        %vm856 = vcmp.eq.f32.partialorder %v680, 0.0
        %v857 = vsel %vm856, -1e+09, %v855
        %v858 = vsel %vm828, %v857, -inf
        %859 = vmax.xlane.f32.xlu0 %v858
        %v860 = vpop.xlane.xlu0 %859
        %v861 = vsub.f32 %v857, %v860
        %v862 = vmul.f32 %v861, 1.442695
        %v863 = vpow.pop %v862
        %v864 = vsel %vm828, %v863, 0.0
        %865 = vadd.xlane.f32.xlu0 %v864
        %v866 = vpop.xlane.xlu0 %865
        %v867 = vrcp.pop %v866
        %v868 = vmul.f32 %v866, %v867
        %v869 = vsub.f32 1.0, %v868
        %v870 = vmul.f32 %v867, %v869
        %v871 = vadd.f32 %v867, %v870
        %vm872 = vweird.f32 %v866
        %vm873 = vweird.f32 %v867
        %vm874 = vmor %vm872, %vm873
        %v875 = vsel %vm874, %v867, %v871
        %v876 = vand.u32 2147483647, %v866
        %vm877 = vcmp.eq.f32.partialorder %v876, 8.507059e+37
        %v878 = vand.u32 %v866, 2147483648
        %v879 = vor.u32 1.1754944e-38, %v878
        %v880 = vsel %vm877, %v879, %v875
        %v881 = vmul.f32 %v863, %v880
        %v883 = vsel %vm828, %v881, 0
        %885 = vmatpush.msra.mxu0 0.0
        %886 = vmatpush.msra.mxu0 0.0
        %887 = vmatpush.msra.mxu0 0.0
        %888 = vmatpush.msra.mxu0 0.0
        %889 = vmatpush.msra.mxu0 0.0
        %890 = vmatpush.msra.mxu0 0.0
        %891 = vmatpush.msra.mxu0 0.0
        %892 = vmatpush.msra.mxu0 0.0
        %893 = vmatpush.msra.mxu0 0.0
        %894 = vmatpush.msra.mxu0 0.0
        %895 = vmatpush.msra.mxu0 0.0
        %896 = vmatpush.msra.mxu0 0.0
        %897 = vmatpush.msra.mxu0 0.0
        %898 = vmatpush.msra.mxu0 0.0
        %899 = vmatpush.msra.mxu0 0.0
        %900 = vmatpush.msra.mxu0 %v822
        %901 = vmatmul.f32.gmra.mxu0 %v883
        %v902 = vpop.f32.mrf.mxu0
        %v903 = vadd.f32 0.0, %v902
        %904 = vdwg.mxu0
        %905 = vrot.lane.b32.xlu0 %v766, 120
        %v906 = vpop.permute.xlu0 %905
        %907 = vrot.lane.b32.xlu0 %v794, 120
        %v908 = vpop.permute.xlu0 %907
        %v909 = vsel %vm828, %v906, 0
        %v911 = vsel %vm828, %v908, 0
        %913 = vmatpush.xpose.msra.mxu0 0.0
        %914 = vmatpush.xpose.msra.mxu0 0.0
        %915 = vmatpush.xpose.msra.mxu0 0.0
        %916 = vmatpush.xpose.msra.mxu0 0.0
        %917 = vmatpush.xpose.msra.mxu0 0.0
        %918 = vmatpush.xpose.msra.mxu0 0.0
        %919 = vmatpush.xpose.msra.mxu0 0.0
        %920 = vmatpush.xpose.msra.mxu0 0.0
        %921 = vmatpush.xpose.msra.mxu0 0.0
        %922 = vmatpush.xpose.msra.mxu0 0.0
        %923 = vmatpush.xpose.msra.mxu0 0.0
        %924 = vmatpush.xpose.msra.mxu0 0.0
        %925 = vmatpush.xpose.msra.mxu0 0.0
        %926 = vmatpush.xpose.msra.mxu0 0.0
        %927 = vmatpush.xpose.msra.mxu0 0.0
        %928 = vmatpush.xpose.msra.mxu0 %v911
        %929 = vmatmul.f32.gmra.mxu0 %v909
        %v930 = vpop.f32.mrf.mxu0
        %v931 = vadd.f32 0.0, %v930
        %932 = vdwg.mxu0
        %v933 = vmul.f32 %v931, 0.35355338
        %v934 = vsel %vm856, -1e+09, %v933
        %v935 = vsel %vm828, %v934, -inf
        %936 = vmax.xlane.f32.xlu0 %v935
        %v937 = vpop.xlane.xlu0 %936
        %v938 = vsub.f32 %v934, %v937
        %v939 = vmul.f32 %v938, 1.442695
        %v940 = vpow.pop %v939
        %v941 = vsel %vm828, %v940, 0.0
        %942 = vadd.xlane.f32.xlu0 %v941
        %v943 = vpop.xlane.xlu0 %942
        %v944 = vrcp.pop %v943
        %v945 = vmul.f32 %v943, %v944
        %v946 = vsub.f32 1.0, %v945
        %v947 = vmul.f32 %v944, %v946
        %v948 = vadd.f32 %v944, %v947
        %vm949 = vweird.f32 %v943
        %vm950 = vweird.f32 %v944
        %vm951 = vmor %vm949, %vm950
        %v952 = vsel %vm951, %v944, %v948
        %v953 = vand.u32 2147483647, %v943
        %vm954 = vcmp.eq.f32.partialorder %v953, 8.507059e+37
        %v955 = vand.u32 %v943, 2147483648
        %v956 = vor.u32 1.1754944e-38, %v955
        %v957 = vsel %vm954, %v956, %v952
        %v958 = vmul.f32 %v940, %v957
        %960 = vrot.lane.b32.xlu0 %v822, 120
        %v961 = vpop.permute.xlu0 %960
        %v964 = vsel %vm828, %v958, 0
        %966 = vmatpush.msra.mxu0 0.0
        %967 = vmatpush.msra.mxu0 0.0
        %968 = vmatpush.msra.mxu0 0.0
        %969 = vmatpush.msra.mxu0 0.0
        %970 = vmatpush.msra.mxu0 0.0
        %971 = vmatpush.msra.mxu0 0.0
        %972 = vmatpush.msra.mxu0 0.0
        %973 = vmatpush.msra.mxu0 0.0
        %974 = vmatpush.msra.mxu0 0.0
        %975 = vmatpush.msra.mxu0 0.0
        %976 = vmatpush.msra.mxu0 0.0
        %977 = vmatpush.msra.mxu0 0.0
        %978 = vmatpush.msra.mxu0 0.0
        %979 = vmatpush.msra.mxu0 0.0
        %980 = vmatpush.msra.mxu0 0.0
        %981 = vmatpush.msra.mxu0 %v961
        %982 = vmatmul.f32.gmra.mxu0 %v964
        %v983 = vpop.f32.mrf.mxu0
        %v984 = vadd.f32 0.0, %v983
        %985 = vdwg.mxu0
        %v987 = vsel %vm828, %v984, 0
        %989 = vmatpush.msra.mxu0 0.0
        %990 = vmatpush.msra.mxu0 0.0
        %991 = vmatpush.msra.mxu0 0.0
        %992 = vmatpush.msra.mxu0 0.0
        %993 = vmatpush.msra.mxu0 0.0
        %994 = vmatpush.msra.mxu0 0.0
        %995 = vmatpush.msra.mxu0 0.0
        %996 = vmatpush.msra.mxu0 0.0
        %997 = vmatpush.msra.mxu0 0.0
        %998 = vmatpush.msra.mxu0 0.0
        %999 = vmatpush.msra.mxu0 0.0
        %1000 = vmatpush.msra.mxu0 0.0
        %1001 = vmatpush.msra.mxu0 0.0
        %1002 = vmatpush.msra.mxu0 0.0
        %1003 = vmatpush.msra.mxu0 0.0
        %1004 = vmatpush.msra.mxu0 %v825
        %1005 = vmatmul.f32.gmra.mxu0 %v987
        %v1006 = vpop.f32.mrf.mxu0
        %v1007 = vadd.f32 0.0, %v1006
        %1008 = vdwg.mxu0
        %v1010 = vsel %vm828, %v903, 0
        %1012 = vmatpush.msra.mxu0 0.0
        %1013 = vmatpush.msra.mxu0 0.0
        %1014 = vmatpush.msra.mxu0 0.0
        %1015 = vmatpush.msra.mxu0 0.0
        %1016 = vmatpush.msra.mxu0 0.0
        %1017 = vmatpush.msra.mxu0 0.0
        %1018 = vmatpush.msra.mxu0 0.0
        %1019 = vmatpush.msra.mxu0 0.0
        %1020 = vmatpush.msra.mxu0 0.0
        %1021 = vmatpush.msra.mxu0 0.0
        %1022 = vmatpush.msra.mxu0 0.0
        %1023 = vmatpush.msra.mxu0 0.0
        %1024 = vmatpush.msra.mxu0 0.0
        %1025 = vmatpush.msra.mxu0 0.0
        %1026 = vmatpush.msra.mxu0 0.0
        %1027 = vmatpush.msra.mxu0 %v824
        %1028 = vmatmul.f32.gmra.mxu0 %v1010
        %v1029 = vpop.f32.mrf.mxu0
        %v1030 = vadd.f32 %v1007, %v1029
        %1031 = vdwg.mxu0
        %1032 = vrot.lane.b32.xlu0 %v766, 112
        %v1033 = vpop.permute.xlu0 %1032
        %1034 = vrot.lane.b32.xlu0 %v794, 112
        %v1035 = vpop.permute.xlu0 %1034
        %v1036 = vsel %vm828, %v1033, 0
        %v1038 = vsel %vm828, %v1035, 0
        %1040 = vmatpush.xpose.msra.mxu0 0.0
        %1041 = vmatpush.xpose.msra.mxu0 0.0
        %1042 = vmatpush.xpose.msra.mxu0 0.0
        %1043 = vmatpush.xpose.msra.mxu0 0.0
        %1044 = vmatpush.xpose.msra.mxu0 0.0
        %1045 = vmatpush.xpose.msra.mxu0 0.0
        %1046 = vmatpush.xpose.msra.mxu0 0.0
        %1047 = vmatpush.xpose.msra.mxu0 0.0
        %1048 = vmatpush.xpose.msra.mxu0 0.0
        %1049 = vmatpush.xpose.msra.mxu0 0.0
        %1050 = vmatpush.xpose.msra.mxu0 0.0
        %1051 = vmatpush.xpose.msra.mxu0 0.0
        %1052 = vmatpush.xpose.msra.mxu0 0.0
        %1053 = vmatpush.xpose.msra.mxu0 0.0
        %1054 = vmatpush.xpose.msra.mxu0 0.0
        %1055 = vmatpush.xpose.msra.mxu0 %v1038
        %1056 = vmatmul.f32.gmra.mxu0 %v1036
        %v1057 = vpop.f32.mrf.mxu0
        %v1058 = vadd.f32 0.0, %v1057
        %1059 = vdwg.mxu0
        %v1060 = vmul.f32 %v1058, 0.35355338
        %v1061 = vsel %vm856, -1e+09, %v1060
        %v1062 = vsel %vm828, %v1061, -inf
        %1063 = vmax.xlane.f32.xlu0 %v1062
        %v1064 = vpop.xlane.xlu0 %1063
        %v1065 = vsub.f32 %v1061, %v1064
        %v1066 = vmul.f32 %v1065, 1.442695
        %v1067 = vpow.pop %v1066
        %v1068 = vsel %vm828, %v1067, 0.0
        %1069 = vadd.xlane.f32.xlu0 %v1068
        %v1070 = vpop.xlane.xlu0 %1069
        %v1071 = vrcp.pop %v1070
        %v1072 = vmul.f32 %v1070, %v1071
        %v1073 = vsub.f32 1.0, %v1072
        %v1074 = vmul.f32 %v1071, %v1073
        %v1075 = vadd.f32 %v1071, %v1074
        %vm1076 = vweird.f32 %v1070
        %vm1077 = vweird.f32 %v1071
        %vm1078 = vmor %vm1076, %vm1077
        %v1079 = vsel %vm1078, %v1071, %v1075
        %v1080 = vand.u32 2147483647, %v1070
        %vm1081 = vcmp.eq.f32.partialorder %v1080, 8.507059e+37
        %v1082 = vand.u32 %v1070, 2147483648
        %v1083 = vor.u32 1.1754944e-38, %v1082
        %v1084 = vsel %vm1081, %v1083, %v1079
        %v1085 = vmul.f32 %v1067, %v1084
        %1086 = vrot.lane.b32.xlu0 %v822, 112
        %v1087 = vpop.permute.xlu0 %1086
        %v1090 = vsel %vm828, %v1085, 0
        %1092 = vmatpush.msra.mxu0 0.0
        %1093 = vmatpush.msra.mxu0 0.0
        %1094 = vmatpush.msra.mxu0 0.0
        %1095 = vmatpush.msra.mxu0 0.0
        %1096 = vmatpush.msra.mxu0 0.0
        %1097 = vmatpush.msra.mxu0 0.0
        %1098 = vmatpush.msra.mxu0 0.0
        %1099 = vmatpush.msra.mxu0 0.0
        %1100 = vmatpush.msra.mxu0 0.0
        %1101 = vmatpush.msra.mxu0 0.0
        %1102 = vmatpush.msra.mxu0 0.0
        %1103 = vmatpush.msra.mxu0 0.0
        %1104 = vmatpush.msra.mxu0 0.0
        %1105 = vmatpush.msra.mxu0 0.0
        %1106 = vmatpush.msra.mxu0 0.0
        %1107 = vmatpush.msra.mxu0 %v1087
        %1108 = vmatmul.f32.gmra.mxu0 %v1090
        %v1109 = vpop.f32.mrf.mxu0
        %v1110 = vadd.f32 0.0, %v1109
        %1111 = vdwg.mxu0
        %v1113 = vsel %vm828, %v1110, 0
        %1115 = vmatpush.msra.mxu0 0.0
        %1116 = vmatpush.msra.mxu0 0.0
        %1117 = vmatpush.msra.mxu0 0.0
        %1118 = vmatpush.msra.mxu0 0.0
        %1119 = vmatpush.msra.mxu0 0.0
        %1120 = vmatpush.msra.mxu0 0.0
        %1121 = vmatpush.msra.mxu0 0.0
        %1122 = vmatpush.msra.mxu0 0.0
        %1123 = vmatpush.msra.mxu0 0.0
        %1124 = vmatpush.msra.mxu0 0.0
        %1125 = vmatpush.msra.mxu0 0.0
        %1126 = vmatpush.msra.mxu0 0.0
        %1127 = vmatpush.msra.mxu0 0.0
        %1128 = vmatpush.msra.mxu0 0.0
        %1129 = vmatpush.msra.mxu0 0.0
        %1130 = vmatpush.msra.mxu0 %v826
        %1131 = vmatmul.f32.gmra.mxu0 %v1113
        %v1132 = vpop.f32.mrf.mxu0
        %v1133 = vadd.f32 0.0, %v1132
        %1134 = vdwg.mxu0
        %v1135 = vadd.f32 %v1030, %v1133
        %1136 = vrot.lane.b32.xlu0 %v766, 104
        %v1137 = vpop.permute.xlu0 %1136
        %1138 = vrot.lane.b32.xlu0 %v794, 104
        %v1139 = vpop.permute.xlu0 %1138
        %v1140 = vsel %vm828, %v1137, 0
        %v1142 = vsel %vm828, %v1139, 0
        %1144 = vmatpush.xpose.msra.mxu0 0.0
        %1145 = vmatpush.xpose.msra.mxu0 0.0
        %1146 = vmatpush.xpose.msra.mxu0 0.0
        %1147 = vmatpush.xpose.msra.mxu0 0.0
        %1148 = vmatpush.xpose.msra.mxu0 0.0
        %1149 = vmatpush.xpose.msra.mxu0 0.0
        %1150 = vmatpush.xpose.msra.mxu0 0.0
        %1151 = vmatpush.xpose.msra.mxu0 0.0
        %1152 = vmatpush.xpose.msra.mxu0 0.0
        %1153 = vmatpush.xpose.msra.mxu0 0.0
        %1154 = vmatpush.xpose.msra.mxu0 0.0
        %1155 = vmatpush.xpose.msra.mxu0 0.0
        %1156 = vmatpush.xpose.msra.mxu0 0.0
        %1157 = vmatpush.xpose.msra.mxu0 0.0
        %1158 = vmatpush.xpose.msra.mxu0 0.0
        %1159 = vmatpush.xpose.msra.mxu0 %v1142
        %1160 = vmatmul.f32.gmra.mxu0 %v1140
        %v1161 = vpop.f32.mrf.mxu0
        %v1162 = vadd.f32 0.0, %v1161
        %1163 = vdwg.mxu0
        %v1164 = vmul.f32 %v1162, 0.35355338
        %v1165 = vsel %vm856, -1e+09, %v1164
        %v1166 = vsel %vm828, %v1165, -inf
        %1167 = vmax.xlane.f32.xlu0 %v1166
        %v1168 = vpop.xlane.xlu0 %1167
        %v1169 = vsub.f32 %v1165, %v1168
        %v1170 = vmul.f32 %v1169, 1.442695
        %v1171 = vpow.pop %v1170
        %v1172 = vsel %vm828, %v1171, 0.0
        %1173 = vadd.xlane.f32.xlu0 %v1172
        %v1174 = vpop.xlane.xlu0 %1173
        %v1175 = vrcp.pop %v1174
        %v1176 = vmul.f32 %v1174, %v1175
        %v1177 = vsub.f32 1.0, %v1176
        %v1178 = vmul.f32 %v1175, %v1177
        %v1179 = vadd.f32 %v1175, %v1178
        %vm1180 = vweird.f32 %v1174
        %vm1181 = vweird.f32 %v1175
        %vm1182 = vmor %vm1180, %vm1181
        %v1183 = vsel %vm1182, %v1175, %v1179
        %v1184 = vand.u32 2147483647, %v1174
        %vm1185 = vcmp.eq.f32.partialorder %v1184, 8.507059e+37
        %v1186 = vand.u32 %v1174, 2147483648
        %v1187 = vor.u32 1.1754944e-38, %v1186
        %v1188 = vsel %vm1185, %v1187, %v1183
        %v1189 = vmul.f32 %v1171, %v1188
        %1190 = vrot.lane.b32.xlu0 %v822, 104
        %v1191 = vpop.permute.xlu0 %1190
        %v1194 = vsel %vm828, %v1189, 0
        %1196 = vmatpush.msra.mxu0 0.0
        %1197 = vmatpush.msra.mxu0 0.0
        %1198 = vmatpush.msra.mxu0 0.0
        %1199 = vmatpush.msra.mxu0 0.0
        %1200 = vmatpush.msra.mxu0 0.0
        %1201 = vmatpush.msra.mxu0 0.0
        %1202 = vmatpush.msra.mxu0 0.0
        %1203 = vmatpush.msra.mxu0 0.0
        %1204 = vmatpush.msra.mxu0 0.0
        %1205 = vmatpush.msra.mxu0 0.0
        %1206 = vmatpush.msra.mxu0 0.0
        %1207 = vmatpush.msra.mxu0 0.0
        %1208 = vmatpush.msra.mxu0 0.0
        %1209 = vmatpush.msra.mxu0 0.0
        %1210 = vmatpush.msra.mxu0 0.0
        %1211 = vmatpush.msra.mxu0 %v1191
        %1212 = vmatmul.f32.gmra.mxu0 %v1194
        %v1213 = vpop.f32.mrf.mxu0
        %v1214 = vadd.f32 0.0, %v1213
        %1215 = vdwg.mxu0
        %v1217 = vsel %vm828, %v1214, 0
        %1219 = vmatpush.msra.mxu0 0.0
        %1220 = vmatpush.msra.mxu0 0.0
        %1221 = vmatpush.msra.mxu0 0.0
        %1222 = vmatpush.msra.mxu0 0.0
        %1223 = vmatpush.msra.mxu0 0.0
        %1224 = vmatpush.msra.mxu0 0.0
        %1225 = vmatpush.msra.mxu0 0.0
        %1226 = vmatpush.msra.mxu0 0.0
        %1227 = vmatpush.msra.mxu0 0.0
        %1228 = vmatpush.msra.mxu0 0.0
        %1229 = vmatpush.msra.mxu0 0.0
        %1230 = vmatpush.msra.mxu0 0.0
        %1231 = vmatpush.msra.mxu0 0.0
        %1232 = vmatpush.msra.mxu0 0.0
        %1233 = vmatpush.msra.mxu0 0.0
        %1234 = vmatpush.msra.mxu0 %v827
        %1235 = vmatmul.f32.gmra.mxu0 %v1217
        %v1236 = vpop.f32.mrf.mxu0
        %v1237 = vadd.f32 0.0, %v1236
        %1238 = vdwg.mxu0
        %v1239 = vadd.f32 %v1135, %v1237
        %v1240 = vld [vmem:[%s11] sm:$0x1]
        %v1242 = vperm.slane %v1240, 0
        %v1244 = vadd.f32 %v1239, %v1242
        %v1245 = vadd.f32 %v679, %v1244
        %v1246 = vld [vmem:[%s12] sm:$0x1]
        %v1247 = vld [vmem:[%s13] sm:$0x1]
        %v1248 = vsel %vm683, %v1245, 0.0
        %1249 = vadd.xlane.f32.xlu0 %v1248
        %v1250 = vpop.xlane.xlu0 %1249
        %v1251 = vmul.f32 %v1250, %v693
        %v1252 = vsub.f32 %v1245, %v1251
        %v1253 = vmul.f32 %v1252, %v1252
        %v1254 = vsel %vm683, %v1253, 0.0
        %1255 = vadd.xlane.f32.xlu0 %v1254
        %v1256 = vpop.xlane.xlu0 %1255
        %v1257 = vmul.f32 %v1256, 0.032258064
        %v1258 = vrsqrt.pop %v1257
        %v1259 = vmul.f32 %v1258, %v1257
        %v1260 = vmul.f32 %v1259, %v1258
        %v1261 = vmul.f32 0.5, %v1260
        %v1262 = vsub.f32 1.5, %v1261
        %v1263 = vmul.f32 %v1258, %v1262
        %v1264 = vmul.f32 %v1257, %v1263
        %vm1265 = vcmp.eq.f32.partialorder %v1257, inf
        %v1266 = vsel %vm1265, %v1257, %v1264
        %vm1267 = vcmp.eq.f32.partialorder %v1257, 0.0
        %v1268 = vand.u32 %v1257, 2147483648
        %v1269 = vsel %vm1267, %v1268, %v1266
        %v1271 = vperm.slane %v1246, 0
        %v1273 = vmul.f32 %v1271, %v1252
        %v1274 = vadd.f32 %v1269, 1e-06
        %v1275 = vrcp.pop %v1274
        %v1276 = vmul.f32 %v1274, %v1275
        %v1277 = vsub.f32 1.0, %v1276
        %v1278 = vmul.f32 %v1275, %v1277
        %v1279 = vadd.f32 %v1275, %v1278
        %vm1280 = vweird.f32 %v1274
        %vm1281 = vweird.f32 %v1275
        %vm1282 = vmor %vm1280, %vm1281
        %v1283 = vsel %vm1282, %v1275, %v1279
        %v1284 = vand.u32 2147483647, %v1274
        %vm1285 = vcmp.eq.f32.partialorder %v1284, 8.507059e+37
        %v1286 = vand.u32 %v1274, 2147483648
        %v1287 = vor.u32 1.1754944e-38, %v1286
        %v1288 = vsel %vm1285, %v1287, %v1283
        %v1289 = vmul.f32 %v1273, %v1288
        %v1291 = vperm.slane %v1247, 0
        %v1293 = vadd.f32 %v1289, %v1291
        %v1294 = vld [vmem:[#allocation10] sm:$0xff]
        %v1295 = vld [vmem:[#allocation10 + $0x8] sm:$0xff]
        %v1296 = vld [vmem:[#allocation10 + $0x10] sm:$0xff]
        %v1297 = vld [vmem:[#allocation10 + $0x18] sm:$0xff]
        %v1298 = vld [vmem:[%s15] sm:$0x1]
        %v1300 = vperm.slane %v1298, 0
        %v1303 = vsel %vm683, %v1293, 0
        %1305 = vmatpush.msra.mxu0 0.0
        %1306 = vmatpush.msra.mxu0 0.0
        %1307 = vmatpush.msra.mxu0 0.0
        %1308 = vmatpush.msra.mxu0 0.0
        %1309 = vmatpush.msra.mxu0 0.0
        %1310 = vmatpush.msra.mxu0 0.0
        %1311 = vmatpush.msra.mxu0 0.0
        %1312 = vmatpush.msra.mxu0 0.0
        %1313 = vmatpush.msra.mxu0 0.0
        %1314 = vmatpush.msra.mxu0 0.0
        %1315 = vmatpush.msra.mxu0 0.0
        %1316 = vmatpush.msra.mxu0 0.0
        %1317 = vmatpush.msra.mxu0 %v1297
        %1318 = vmatpush.msra.mxu0 %v1296
        %1319 = vmatpush.msra.mxu0 %v1295
        %1320 = vmatpush.msra.mxu0 %v1294
        %1321 = vmatmul.f32.gmra.mxu0 %v1303
        %v1322 = vpop.f32.mrf.mxu0
        %v1323 = vadd.f32 %v1300, %v1322
        %1324 = vdwg.mxu0
        %v1325 = vmax.f32 %v1323, 0.0
        %v1326 = vld [vmem:[%s16] sm:$0xff]
        %v1327 = vld [vmem:[%s16 + $0x8] sm:$0xff]
        %v1328 = vld [vmem:[%s16 + $0x10] sm:$0xff]
        %v1329 = vld [vmem:[%s16 + $0x18] sm:$0xff]
        %v1330 = vld [vmem:[%s16 + $0x20] sm:$0xff]
        %v1331 = vld [vmem:[%s16 + $0x28] sm:$0xff]
        %v1332 = vld [vmem:[%s16 + $0x30] sm:$0xff]
        %v1333 = vld [vmem:[%s16 + $0x38] sm:$0xff]
        %v1334 = vld [vmem:[%s17] sm:$0x1]
        %v1336 = vperm.slane %v1334, 0
        %vm1338 = vcmask 523264
        %v1340 = vsel %vm1338, %v1325, 0
        %1342 = vmatpush.msra.mxu0 0.0
        %1343 = vmatpush.msra.mxu0 0.0
        %1344 = vmatpush.msra.mxu0 0.0
        %1345 = vmatpush.msra.mxu0 0.0
        %1346 = vmatpush.msra.mxu0 0.0
        %1347 = vmatpush.msra.mxu0 0.0
        %1348 = vmatpush.msra.mxu0 0.0
        %1349 = vmatpush.msra.mxu0 0.0
        %1350 = vmatpush.msra.mxu0 %v1333
        %1351 = vmatpush.msra.mxu0 %v1332
        %1352 = vmatpush.msra.mxu0 %v1331
        %1353 = vmatpush.msra.mxu0 %v1330
        %1354 = vmatpush.msra.mxu0 %v1329
        %1355 = vmatpush.msra.mxu0 %v1328
        %1356 = vmatpush.msra.mxu0 %v1327
        %1357 = vmatpush.msra.mxu0 %v1326
        %1358 = vmatmul.f32.gmra.mxu0 %v1340
        %v1359 = vpop.f32.mrf.mxu0
        %v1360 = vadd.f32 %v1336, %v1359
        %1361 = vdwg.mxu0
        %v1362 = vadd.f32 %v1245, %v1360
        %1363 = vst.msk [vmem:[%s678] sm:$0xff] %vm683, %v1362
        %s1364 = sand.u32 %s435, 1
        %s1365 = scalar_lea.sflag [#allocation4], %s1364
        %s1366 = sand.u32 %s435, 1
        %s1367 = smul.addr %s1366, 8
        %s1368 = scalar_lea.vmem [#allocation11], %s1367
        // Predicated region
        $region113: #{tpu_custom_call.1} parent=91 // pred_check
          %p1369 = pneg %p445
        $region114: #{tpu_custom_call.1} parent=91 // pred_check_branch
          %1371 = sbr.rel (%p1369) target = $region116
        $region115: #{tpu_custom_call.1} parent=91 // pred_region
          %1373 = vsyncadd %s1365, 0
          %s1374 = smul.addr %s39, 8
          %s1375 = scalar_lea.hbm %s18, %s1374
          %s1377 = sshll.u32 %s1368, 4
          %s1378 = int_to_ptr.vmem [resolvable:$true] %s1377
          %s1379 = sshll.u32 %s1375, 4
          %s1380 = int_to_ptr.hbm [resolvable:$true] %s1379
          %1382 = dma.vmem_to_hbm [thread:$0]  %s1378, 128, %s1380, %s1365
        $region116: #{tpu_custom_call.1} parent=91 // pred_fallthru
          _
      $region92: #{tpu_custom_call.1} parent=5 // pred_fallthru
        _
      %p1383 = scmp.le.s32.totalorder 2, %s34
      // Predicated region
      $region117: #{tpu_custom_call.1} parent=5 // pred_check
        %p1384 = pneg %p1383
      $region118: #{tpu_custom_call.1} parent=5 // pred_check_branch
        %1386 = sbr.rel (%p1384) target = $region120
      $region119: #{tpu_custom_call.1} parent=5 // pred_region
        %s1387 = ssub.s32 %s34, 2
        // Predicated region
        $region121: #{tpu_custom_call.1} parent=119 // pred_check
          %p1388 = pneg %p451
        $region122: #{tpu_custom_call.1} parent=119 // pred_check_branch
          %1390 = sbr.rel (%p1388) target = $region124
        $region123: #{tpu_custom_call.1} parent=119 // pred_region
          %s1391 = sand.u32 %s436, 1
          %s1392 = scalar_lea.sflag [#allocation4], %s1391
          %s1393 = sand.u32 %s436, 1
          %s1394 = smul.addr %s1393, 8
          %s1395 = scalar_lea.vmem [#allocation11], %s1394
          %1397 = dma.done %s1392, 128
        $region124: #{tpu_custom_call.1} parent=119 // pred_fallthru
          _
      $region120: #{tpu_custom_call.1} parent=5 // pred_fallthru
        _
    $region6: #{tpu_custom_call.1} parent=1 // loop_footer
      %s38 = sadd.s32 1, %s34
    $region7: #{tpu_custom_call.1} parent=1 // loop_footer_branch
      %33 = sbr.rel target = $region3
    $region8: #{tpu_custom_call.1} parent=1 // loop_exit
      _
    %1398 = vsyncpa [#allocation3], 1
    %s1399 = scalar_lea.sflag [#allocation3], 1
    %1400 = vsyncpa %s1399, 1
    %1401 = vsyncpa [#allocation6], 1
    %s1402 = scalar_lea.sflag [#allocation6], 1
    %1403 = vsyncpa %s1402, 1
    %1404 = vsyncpa [#allocation9], 1
    %1405 = vsyncpa [#allocation4], 1
    %s1406 = scalar_lea.sflag [#allocation4], 1
    %1407 = vsyncpa %s1406, 1

</llo_original>
